<compile_context>
chip_gen: v7x
topology: tpu7x:2x2x1
jax: 0.10.0
libtpu: 0.0.40
codegen_flags: <defaults>
</compile_context>

<pallas_src>
import jax
import jax.numpy as jnp
from jax.experimental import pallas as pl
from jax.experimental.pallas import tpu as pltpu


def _round_up(v, m):
    return ((v + m - 1) // m) * m


def _divisor_tile(np_pad, target):
    """Largest multiple of 128 that is <= target and divides np_pad (>= 128)."""
    t = max(128, min((target // 128) * 128, np_pad))
    while np_pad % t != 0:
        t -= 128
    return t


def gin_net(x, edge_index, w1, b1, w2, b2):
    N, _ = x.shape
    hidden = w1.shape[1]
    out_dim = w2.shape[1]

    H_PAD = _round_up(hidden, 128)
    O_PAD = _round_up(out_dim, 128)
    NP = _round_up(N, 128)                       # padding decoupled from tile size

    # ---- generation-aware tiling / VMEM budget -----------------------------
    try:
        kind = jax.devices()[0].device_kind.lower()
    except Exception:
        kind = ""
    is_v7 = "v7" in kind
    vmem_limit = (40 if is_v7 else 64) * 1024 * 1024

    TILE_M = _divisor_tile(NP, 512)
    if is_v7 and NP >= 256:
        TILE_M = _divisor_tile(NP, min(TILE_M, NP // 2))   # keep both TCs busy
    TILE_K = _divisor_tile(NP, 1024 if is_v7 else 2048)

    def _kernel_bytes(tm, tk):
        a_stream = 2 * tm * tk * 2                              # bf16 A, 2 buffers
        resident = 2 * NP * max(H_PAD, O_PAD) * 4               # xw1 / p resident
        weights = 2 * (H_PAD * O_PAD + H_PAD + O_PAD) * 4
        acc = tm * H_PAD * 4
        out = 2 * tm * O_PAD * 4
        return a_stream + resident + weights + acc + out

    while TILE_K > 128 and _kernel_bytes(TILE_M, TILE_K) > int(0.75 * vmem_limit):
        TILE_K = _divisor_tile(NP, TILE_K - 128)

    n_row = NP // TILE_M
    n_col = NP // TILE_K

    compiler_params = pltpu.CompilerParams(
        dimension_semantics=("parallel", "arbitrary"),
        vmem_limit_bytes=vmem_limit,
    )

    # ---- wrapper-side prep --------------------------------------------------
    # A_hat = A + I at the padded shape, +I folded into the scatter, cast to bf16
    # (small exact integers -> lossless) to halve the dominant HBM stream.
    # Message flow source -> target: row = target, col = source.
    src = edge_index[0]
    dst = edge_index[1]
    diag = jnp.arange(N)
    a_hat = (jnp.zeros((NP, NP), jnp.float32)
             .at[dst, src].add(1.0)
             .at[diag, diag].add(1.0)).astype(jnp.bfloat16)

    # Layer-1 reassociation: (A_hat @ x) @ W1 == A_hat @ (x @ W1).
    xw1 = jnp.zeros((NP, H_PAD), jnp.float32).at[:N, :hidden].set(x @ w1)
    b1_p = jnp.zeros((1, H_PAD), jnp.float32).at[0, :hidden].set(b1)
    w2_p = jnp.zeros((H_PAD, O_PAD), jnp.float32).at[:hidden, :out_dim].set(w2)
    b2_p = jnp.zeros((1, O_PAD), jnp.float32).at[0, :out_dim].set(b2)

    # ======================= layer 1 kernel =================================
    # p = relu(A_hat @ (x @ W1) + b1) @ W2          (dropout: eval identity)
    def layer1_kernel(a_ref, xw1_ref, b1_ref, w2_ref, p_ref, acc_ref):
        k = pl.program_id(1)

        @pl.when(k == 0)
        def _():
            acc_ref[...] = jnp.zeros_like(acc_ref)

        start = pl.multiple_of(k * TILE_K, TILE_K)
        acc_ref[...] += jnp.dot(a_ref[...].astype(jnp.float32),
                                xw1_ref[pl.ds(start, TILE_K), :],
                                preferred_element_type=jnp.float32)

        @pl.when(k == pl.num_programs(1) - 1)
        def _():
            h = jnp.maximum(acc_ref[...] + b1_ref[...], 0.0)
            # dropout(p=0.2, training=False) -> identity
            p_ref[...] = jnp.dot(h, w2_ref[...],
                                 preferred_element_type=jnp.float32)

    p = pl.pallas_call(
        layer1_kernel,
        out_shape=jax.ShapeDtypeStruct((NP, O_PAD), jnp.float32),
        grid_spec=pltpu.PrefetchScalarGridSpec(
            num_scalar_prefetch=0,
            grid=(n_row, n_col),
            in_specs=[
                pl.BlockSpec((TILE_M, TILE_K), lambda i, k: (i, k)),   # A_hat (bf16)
                pl.BlockSpec((NP, H_PAD), lambda i, k: (0, 0)),        # xw1 resident
                pl.BlockSpec((1, H_PAD), lambda i, k: (0, 0)),         # b1
                pl.BlockSpec((H_PAD, O_PAD), lambda i, k: (0, 0)),     # W2
            ],
            out_specs=pl.BlockSpec((TILE_M, O_PAD), lambda i, k: (i, 0)),
            scratch_shapes=[pltpu.VMEM((TILE_M, H_PAD), jnp.float32)],
        ),
        compiler_params=compiler_params,
    )(a_hat, xw1, b1_p, w2_p)

    # ======================= layer 2 kernel =================================
    # out = log_softmax(A_hat @ p + b2) over the first `out_dim` lanes.
    # Accumulate directly into the resident output block (no scratch).
    def layer2_kernel(a_ref, p_ref, b2_ref, o_ref):
        k = pl.program_id(1)

        @pl.when(k == 0)
        def _():
            o_ref[...] = jnp.zeros_like(o_ref)

        start = pl.multiple_of(k * TILE_K, TILE_K)
        o_ref[...] += jnp.dot(a_ref[...].astype(jnp.float32),
                              p_ref[pl.ds(start, TILE_K), :],
                              preferred_element_type=jnp.float32)

        @pl.when(k == pl.num_programs(1) - 1)
        def _():
            z = o_ref[...] + b2_ref[...]
            lane = jax.lax.broadcasted_iota(jnp.int32, z.shape, 1)
            valid = lane < out_dim
            m = jnp.max(jnp.where(valid, z, -jnp.inf), axis=1, keepdims=True)
            s = z - m
            e = jnp.exp(jnp.where(valid, s, -jnp.inf))     # mask before exp
            lse = jnp.log(jnp.sum(e, axis=1, keepdims=True))
            o_ref[...] = s - lse   # padded lanes hold garbage; sliced off outside

    out_pad = pl.pallas_call(
        layer2_kernel,
        out_shape=jax.ShapeDtypeStruct((NP, O_PAD), jnp.float32),
        grid_spec=pltpu.PrefetchScalarGridSpec(
            num_scalar_prefetch=0,
            grid=(n_row, n_col),
            in_specs=[
                pl.BlockSpec((TILE_M, TILE_K), lambda i, k: (i, k)),   # A_hat (bf16)
                pl.BlockSpec((NP, O_PAD), lambda i, k: (0, 0)),        # p resident
                pl.BlockSpec((1, O_PAD), lambda i, k: (0, 0)),         # b2
            ],
            out_specs=pl.BlockSpec((TILE_M, O_PAD), lambda i, k: (i, 0)),
        ),
        compiler_params=compiler_params,
    )(a_hat, p, b2_p)

    return out_pad[:N, :out_dim]


def gin_net_ref(x, edge_index, w1, b1, w2, b2):
    """Pure-JAX reference for correctness checking."""
    N = x.shape[0]
    src, dst = edge_index[0], edge_index[1]
    adj = jnp.zeros((N, N), jnp.float32).at[dst, src].add(1.0)
    h = jnp.maximum((x + adj @ x) @ w1 + b1, 0.0)
    z = (h + adj @ h) @ w2 + b2
    return jax.nn.log_softmax(z, axis=1)


if __name__ == "__main__":
    # Small, deterministic setup.
    N = 16          # number of graph nodes
    E = 40          # number of directed edges
    IN_DIM = 8
    HIDDEN = 32
    OUT_DIM = 8

    key = jax.random.PRNGKey(0)
    k_x, k_e1, k_e2, k_w1, k_b1, k_w2, k_b2 = jax.random.split(key, 7)

    x = jax.random.normal(k_x, (N, IN_DIM), dtype=jnp.float32)
    edge_src = jax.random.randint(k_e1, (E,), 0, N)
    edge_dst = jax.random.randint(k_e2, (E,), 0, N)
    edge_index = jnp.stack([edge_src, edge_dst], axis=0)  # (2, E)

    # Deterministic nn.Linear-style init (uniform +-1/sqrt(fan_in)); weights
    # stored as (in_features, out_features) i.e. transposed vs PyTorch.
    lim1 = 1.0 / jnp.sqrt(IN_DIM)
    w1 = jax.random.uniform(k_w1, (IN_DIM, HIDDEN), jnp.float32, -lim1, lim1)
    b1 = jax.random.uniform(k_b1, (HIDDEN,), jnp.float32, -lim1, lim1)
    lim2 = 1.0 / jnp.sqrt(HIDDEN)
    w2 = jax.random.uniform(k_w2, (HIDDEN, OUT_DIM), jnp.float32, -lim2, lim2)
    b2 = jax.random.uniform(k_b2, (OUT_DIM,), jnp.float32, -lim2, lim2)

    gin_fn = jax.jit(gin_net)
    out = gin_fn(x, edge_index, w1, b1, w2, b2)
    out = jax.block_until_ready(out)

    ref = gin_net_ref(x, edge_index, w1, b1, w2, b2)
    assert out.shape == (N, OUT_DIM)
    assert jnp.allclose(out, ref, atol=1e-4, rtol=1e-4), "mismatch vs JAX reference"

    print("KERNEL_OK")
</pallas_src>

<mosaic_0001>
module attributes {stable_mosaic.version = 11 : i64} {
  func.func private @main(%arg0: i32) attributes {dimension_semantics = [#tpu.dimension_semantics<core_parallel>], iteration_bounds = array<i64: 2>, tpu.core_type = #tpu.core_type<sc_scalar_subcore>, window_params = []} {
    return
  }
}

module attributes {stable_mosaic.version = 11 : i64} {
  func.func private @main(%arg0: i32) attributes {dimension_semantics = [#tpu.dimension_semantics<core_parallel>], iteration_bounds = array<i64: 2>, tpu.core_type = #tpu.core_type<sc_scalar_subcore>, window_params = []} {
    return
  }
}

module attributes {stable_mosaic.version = 11 : i64} {
  func.func @layer1_kernel(%arg0: i32, %arg1: i32, %arg2: memref<128x128xbf16, #tpu.memory_space<vmem>>, %arg3: memref<128x128xf32, #tpu.memory_space<vmem>>, %arg4: memref<1x128xf32, #tpu.memory_space<vmem>>, %arg5: memref<128x128xf32, #tpu.memory_space<vmem>>, %arg6: memref<128x128xf32, #tpu.memory_space<vmem>>, %arg7: memref<128x128xf32, #tpu.memory_space<vmem>>) attributes {dimension_semantics = [#tpu.dimension_semantics<parallel>, #tpu.dimension_semantics<arbitrary>], iteration_bounds = array<i64: 1, 1>, scalar_prefetch = 0 : i64, scratch_operands = 1 : i64, tpu.core_type = #tpu.core_type<tc>, window_params = [{transform_indices = @transform_0, window_bounds = array<i64: 128, 128>}, {pipeline_mode = #tpu.pipeline_mode<synchronous>, transform_indices = @transform_1, window_bounds = array<i64: 128, 128>}, {pipeline_mode = #tpu.pipeline_mode<synchronous>, transform_indices = @transform_2, window_bounds = array<i64: 1, 128>}, {pipeline_mode = #tpu.pipeline_mode<synchronous>, transform_indices = @transform_3, window_bounds = array<i64: 128, 128>}, {transform_indices = @transform_4, window_bounds = array<i64: 128, 128>}]} {
    %c0_i32 = arith.constant 0 : i32
    %0 = arith.cmpi eq, %arg1, %c0_i32 : i32
    %1 = arith.extui %0 : i1 to i32
    %c0_i32_0 = arith.constant 0 : i32
    %2 = arith.cmpi ne, %1, %c0_i32_0 : i32
    scf.if %2 {
      %cst_9 = arith.constant 0.000000e+00 : f32
      %16 = vector.broadcast %cst_9 : f32 to vector<128x128xf32>
      %c0_10 = arith.constant 0 : index
      %c0_11 = arith.constant 0 : index
      %17 = vector.load %arg7[%c0_10, %c0_11] : memref<128x128xf32, #tpu.memory_space<vmem>>, vector<128x128xf32>
      tpu.vector_store %arg7[%c0_10, %c0_11], %16 {strides = array<i32>} : memref<128x128xf32, #tpu.memory_space<vmem>>, vector<128x128xf32>,
    } else {
    }
    %c128_i32 = arith.constant 128 : i32
    %3 = arith.muli %arg1, %c128_i32 : i32
    %4 = tpu.assume_multiple %3, 128 : i32
    %c0 = arith.constant 0 : index
    %c0_1 = arith.constant 0 : index
    %5 = vector.load %arg7[%c0, %c0_1] : memref<128x128xf32, #tpu.memory_space<vmem>>, vector<128x128xf32>
    %c0_2 = arith.constant 0 : index
    %c0_3 = arith.constant 0 : index
    %6 = vector.load %arg2[%c0_2, %c0_3] : memref<128x128xbf16, #tpu.memory_space<vmem>>, vector<128x128xbf16>
    %7 = arith.extf %6 : vector<128x128xbf16> to vector<128x128xf32>
    %8 = arith.index_cast %4 : i32 to index
    %c0_4 = arith.constant 0 : index
    %9 = vector.load %arg3[%8, %c0_4] : memref<128x128xf32, #tpu.memory_space<vmem>>, vector<128x128xf32>
    %cst = arith.constant dense<0.000000e+00> : vector<128x128xf32>
    %10 = tpu.matmul %7, %9, %cst {dimension_numbers = #tpu.dot_dimension_numbers<[1], [0], [0], [1], [0, 0, 1, 1], [], []>} : vector<128x128xf32>, vector<128x128xf32>, vector<128x128xf32> -> vector<128x128xf32>
    %11 = arith.addf %5, %10 : vector<128x128xf32>
    %c0_5 = arith.constant 0 : index
    %c0_6 = arith.constant 0 : index
    %12 = vector.load %arg7[%c0_5, %c0_6] : memref<128x128xf32, #tpu.memory_space<vmem>>, vector<128x128xf32>
    tpu.vector_store %arg7[%c0_5, %c0_6], %11 {strides = array<i32>} : memref<128x128xf32, #tpu.memory_space<vmem>>, vector<128x128xf32>,
    %c0_i32_7 = arith.constant 0 : i32
    %13 = arith.cmpi eq, %arg1, %c0_i32_7 : i32
    %14 = arith.extui %13 : i1 to i32
    %c0_i32_8 = arith.constant 0 : i32
    %15 = arith.cmpi ne, %14, %c0_i32_8 : i32
    scf.if %15 {
      %c0_9 = arith.constant 0 : index
      %c0_10 = arith.constant 0 : index
      %16 = vector.load %arg7[%c0_9, %c0_10] : memref<128x128xf32, #tpu.memory_space<vmem>>, vector<128x128xf32>
      %c0_11 = arith.constant 0 : index
      %c0_12 = arith.constant 0 : index
      %17 = vector.load %arg4[%c0_11, %c0_12] : memref<1x128xf32, #tpu.memory_space<vmem>>, vector<1x128xf32>
      %18 = vector.broadcast %17 : vector<1x128xf32> to vector<128x128xf32>
      %19 = arith.addf %16, %18 : vector<128x128xf32>
      %cst_13 = arith.constant 0.000000e+00 : f32
      %20 = vector.broadcast %cst_13 : f32 to vector<128x128xf32>
      %21 = arith.maximumf %19, %20 : vector<128x128xf32>
      %c0_14 = arith.constant 0 : index
      %c0_15 = arith.constant 0 : index
      %22 = vector.load %arg5[%c0_14, %c0_15] : memref<128x128xf32, #tpu.memory_space<vmem>>, vector<128x128xf32>
      %cst_16 = arith.constant dense<0.000000e+00> : vector<128x128xf32>
      %23 = tpu.matmul %21, %22, %cst_16 {dimension_numbers = #tpu.dot_dimension_numbers<[1], [0], [0], [1], [0, 0, 1, 1], [], []>} : vector<128x128xf32>, vector<128x128xf32>, vector<128x128xf32> -> vector<128x128xf32>
      %c0_17 = arith.constant 0 : index
      %c0_18 = arith.constant 0 : index
      %24 = vector.load %arg6[%c0_17, %c0_18] : memref<128x128xf32, #tpu.memory_space<vmem>>, vector<128x128xf32>
      tpu.vector_store %arg6[%c0_17, %c0_18], %23 {strides = array<i32>} : memref<128x128xf32, #tpu.memory_space<vmem>>, vector<128x128xf32>,
    } else {
    }
    return
  }
  func.func @transform_0(%arg0: i32, %arg1: i32) -> (i32, i32) {
    %c0_i32 = arith.constant 0 : i32
    return %arg0, %arg1 : i32, i32
  }
  func.func @transform_1(%arg0: i32, %arg1: i32) -> (i32, i32) {
    %c0_i32 = arith.constant 0 : i32
    %c0_i32_0 = arith.constant 0 : i32
    %c0_i32_1 = arith.constant 0 : i32
    return %c0_i32, %c0_i32_0 : i32, i32
  }
  func.func @transform_2(%arg0: i32, %arg1: i32) -> (i32, i32) {
    %c0_i32 = arith.constant 0 : i32
    %c0_i32_0 = arith.constant 0 : i32
    %c0_i32_1 = arith.constant 0 : i32
    return %c0_i32, %c0_i32_0 : i32, i32
  }
  func.func @transform_3(%arg0: i32, %arg1: i32) -> (i32, i32) {
    %c0_i32 = arith.constant 0 : i32
    %c0_i32_0 = arith.constant 0 : i32
    %c0_i32_1 = arith.constant 0 : i32
    return %c0_i32, %c0_i32_0 : i32, i32
  }
  func.func @transform_4(%arg0: i32, %arg1: i32) -> (i32, i32) {
    %c0_i32 = arith.constant 0 : i32
    %c0_i32_0 = arith.constant 0 : i32
    return %arg0, %c0_i32 : i32, i32
  }
}

module attributes {stable_mosaic.version = 11 : i64} {
  func.func @layer2_kernel(%arg0: i32, %arg1: i32, %arg2: memref<128x128xbf16, #tpu.memory_space<vmem>>, %arg3: memref<128x128xf32, #tpu.memory_space<vmem>>, %arg4: memref<1x128xf32, #tpu.memory_space<vmem>>, %arg5: memref<128x128xf32, #tpu.memory_space<vmem>>) attributes {dimension_semantics = [#tpu.dimension_semantics<parallel>, #tpu.dimension_semantics<arbitrary>], iteration_bounds = array<i64: 1, 1>, scalar_prefetch = 0 : i64, scratch_operands = 0 : i64, tpu.core_type = #tpu.core_type<tc>, window_params = [{transform_indices = @transform_0, window_bounds = array<i64: 128, 128>}, {pipeline_mode = #tpu.pipeline_mode<synchronous>, transform_indices = @transform_1, window_bounds = array<i64: 128, 128>}, {pipeline_mode = #tpu.pipeline_mode<synchronous>, transform_indices = @transform_2, window_bounds = array<i64: 1, 128>}, {transform_indices = @transform_3, window_bounds = array<i64: 128, 128>}]} {
    %c0_i32 = arith.constant 0 : i32
    %0 = arith.cmpi eq, %arg1, %c0_i32 : i32
    %1 = arith.extui %0 : i1 to i32
    %c0_i32_0 = arith.constant 0 : i32
    %2 = arith.cmpi ne, %1, %c0_i32_0 : i32
    scf.if %2 {
      %cst_9 = arith.constant 0.000000e+00 : f32
      %16 = vector.broadcast %cst_9 : f32 to vector<128x128xf32>
      %c0_10 = arith.constant 0 : index
      %c0_11 = arith.constant 0 : index
      %17 = vector.load %arg5[%c0_10, %c0_11] : memref<128x128xf32, #tpu.memory_space<vmem>>, vector<128x128xf32>
      tpu.vector_store %arg5[%c0_10, %c0_11], %16 {strides = array<i32>} : memref<128x128xf32, #tpu.memory_space<vmem>>, vector<128x128xf32>,
    } else {
    }
    %c128_i32 = arith.constant 128 : i32
    %3 = arith.muli %arg1, %c128_i32 : i32
    %4 = tpu.assume_multiple %3, 128 : i32
    %c0 = arith.constant 0 : index
    %c0_1 = arith.constant 0 : index
    %5 = vector.load %arg5[%c0, %c0_1] : memref<128x128xf32, #tpu.memory_space<vmem>>, vector<128x128xf32>
    %c0_2 = arith.constant 0 : index
    %c0_3 = arith.constant 0 : index
    %6 = vector.load %arg2[%c0_2, %c0_3] : memref<128x128xbf16, #tpu.memory_space<vmem>>, vector<128x128xbf16>
    %7 = arith.extf %6 : vector<128x128xbf16> to vector<128x128xf32>
    %8 = arith.index_cast %4 : i32 to index
    %c0_4 = arith.constant 0 : index
    %9 = vector.load %arg3[%8, %c0_4] : memref<128x128xf32, #tpu.memory_space<vmem>>, vector<128x128xf32>
    %cst = arith.constant dense<0.000000e+00> : vector<128x128xf32>
    %10 = tpu.matmul %7, %9, %cst {dimension_numbers = #tpu.dot_dimension_numbers<[1], [0], [0], [1], [0, 0, 1, 1], [], []>} : vector<128x128xf32>, vector<128x128xf32>, vector<128x128xf32> -> vector<128x128xf32>
    %11 = arith.addf %5, %10 : vector<128x128xf32>
    %c0_5 = arith.constant 0 : index
    %c0_6 = arith.constant 0 : index
    %12 = vector.load %arg5[%c0_5, %c0_6] : memref<128x128xf32, #tpu.memory_space<vmem>>, vector<128x128xf32>
    tpu.vector_store %arg5[%c0_5, %c0_6], %11 {strides = array<i32>} : memref<128x128xf32, #tpu.memory_space<vmem>>, vector<128x128xf32>,
    %c0_i32_7 = arith.constant 0 : i32
    %13 = arith.cmpi eq, %arg1, %c0_i32_7 : i32
    %14 = arith.extui %13 : i1 to i32
    %c0_i32_8 = arith.constant 0 : i32
    %15 = arith.cmpi ne, %14, %c0_i32_8 : i32
    scf.if %15 {
      %c0_9 = arith.constant 0 : index
      %c0_10 = arith.constant 0 : index
      %16 = vector.load %arg5[%c0_9, %c0_10] : memref<128x128xf32, #tpu.memory_space<vmem>>, vector<128x128xf32>
      %c0_11 = arith.constant 0 : index
      %c0_12 = arith.constant 0 : index
      %17 = vector.load %arg4[%c0_11, %c0_12] : memref<1x128xf32, #tpu.memory_space<vmem>>, vector<1x128xf32>
      %18 = vector.broadcast %17 : vector<1x128xf32> to vector<128x128xf32>
      %19 = arith.addf %16, %18 : vector<128x128xf32>
      %20 = tpu.iota {dimensions = array<i32: 1>} : vector<128x128xi32>
      %c8_i32 = arith.constant 8 : i32
      %21 = vector.broadcast %c8_i32 : i32 to vector<128x128xi32>
      %22 = arith.cmpi slt, %20, %21 : vector<128x128xi32>
      %cst_13 = arith.constant 0xFF800000 : f32
      %23 = vector.broadcast %cst_13 : f32 to vector<128x128xf32>
      %24 = arith.select %22, %19, %23 : vector<128x128xi1>, vector<128x128xf32>
      %cst_14 = arith.constant dense<0xFF800000> : vector<128xf32>
      %25 = vector.multi_reduction <maximumf>, %24, %cst_14 [1] : vector<128x128xf32> to vector<128xf32>
      %26 = vector.shape_cast %25 : vector<128xf32> to vector<128x1xf32>
      %27 = vector.broadcast %26 : vector<128x1xf32> to vector<128x128xf32>
      %28 = arith.subf %19, %27 : vector<128x128xf32>
      %cst_15 = arith.constant 0xFF800000 : f32
      %29 = vector.broadcast %cst_15 : f32 to vector<128x128xf32>
      %30 = arith.select %22, %28, %29 : vector<128x128xi1>, vector<128x128xf32>
      %31 = math.exp %30 : vector<128x128xf32>
      %cst_16 = arith.constant dense<0.000000e+00> : vector<128xf32>
      %32 = vector.multi_reduction <add>, %31, %cst_16 [1] : vector<128x128xf32> to vector<128xf32>
      %33 = vector.shape_cast %32 : vector<128xf32> to vector<128x1xf32>
      %34 = math.log %33 : vector<128x1xf32>
      %35 = vector.broadcast %34 : vector<128x1xf32> to vector<128x128xf32>
      %36 = arith.subf %28, %35 : vector<128x128xf32>
      %c0_17 = arith.constant 0 : index
      %c0_18 = arith.constant 0 : index
      %37 = vector.load %arg5[%c0_17, %c0_18] : memref<128x128xf32, #tpu.memory_space<vmem>>, vector<128x128xf32>
      tpu.vector_store %arg5[%c0_17, %c0_18], %36 {strides = array<i32>} : memref<128x128xf32, #tpu.memory_space<vmem>>, vector<128x128xf32>,
    } else {
    }
    return
  }
  func.func @transform_0(%arg0: i32, %arg1: i32) -> (i32, i32) {
    %c0_i32 = arith.constant 0 : i32
    return %arg0, %arg1 : i32, i32
  }
  func.func @transform_1(%arg0: i32, %arg1: i32) -> (i32, i32) {
    %c0_i32 = arith.constant 0 : i32
    %c0_i32_0 = arith.constant 0 : i32
    %c0_i32_1 = arith.constant 0 : i32
    return %c0_i32, %c0_i32_0 : i32, i32
  }
  func.func @transform_2(%arg0: i32, %arg1: i32) -> (i32, i32) {
    %c0_i32 = arith.constant 0 : i32
    %c0_i32_0 = arith.constant 0 : i32
    %c0_i32_1 = arith.constant 0 : i32
    return %c0_i32, %c0_i32_0 : i32, i32
  }
  func.func @transform_3(%arg0: i32, %arg1: i32) -> (i32, i32) {
    %c0_i32 = arith.constant 0 : i32
    %c0_i32_0 = arith.constant 0 : i32
    return %arg0, %c0_i32 : i32, i32
  }
}

</mosaic_0001>

<llo_original>
// kernel: gin_net.2
$region0: #{gin_net.2}
  #allocation0 [shape = 'u32[]', space=smem, size = 0x4, offset = 0x4, fixed_abs, tag = 'smem constant byte address 0x4 - core index']
  #allocation1 [shape = 'u32[144,128]{1,0:T(1,128)}', space=vmem, size = 0x12000, scoped, tag = 'internal scratch']
  #allocation2 [shape = 'f32[128,128]{1,0:T(8,128)}', space=vmem, size = 0x10000, scoped, tag = 'scratch operand']
  %s0 = inlined_call_operand.hbm [shape: bf16[128,128], index: 0, kind: input, shape index: {}]
  %s1 = inlined_call_operand.hbm [shape: f32[128,128], index: 1, kind: input, shape index: {}]
  %s2 = inlined_call_operand.hbm [shape: f32[1,128], index: 2, kind: input, shape index: {}]
  %s3 = inlined_call_operand.hbm [shape: f32[128,128], index: 3, kind: input, shape index: {}]
  %s4 = inlined_call_operand.hbm [shape: f32[128,128], index: 4, kind: output, shape index: {}]
  %s5 = sld [smem:[#allocation0]]
  $region50: #{gin_net.2} parent=0
    _
  %s7 = ssub.s32 1, %s5
  %s8 = scalar_select 0, %s7, %s5
  $region1: #{gin_net.2} parent=0
    #allocation3 [shape = 'u8[32768]{0}', space=vmem, size = 0x8000, scoped, tag = 'input window, operand 0, single buffered']
    #allocation4 [shape = 's32[1]{0}', space=sflag, size = 0x4, scoped, tag = 'scoped memory for gin_net.2']
    #allocation5 [shape = 's32[1]{0}', space=sflag, size = 0x4, scoped, tag = 'scoped memory for gin_net.2']
    #allocation6 [shape = 'u8[65536]{0}', space=vmem, size = 0x10000, scoped, tag = 'input window, operand 1, single buffered']
    #allocation7 [shape = 's32[1]{0}', space=sflag, size = 0x4, scoped, tag = 'scoped memory for gin_net.2']
    #allocation8 [shape = 'u8[512]{0}', space=vmem, size = 0x400, scoped, tag = 'input window, operand 2, single buffered']
    #allocation9 [shape = 'u8[65536]{0}', space=vmem, size = 0x10000, scoped, tag = 'input window, operand 3, single buffered']
    #allocation10 [shape = 's32[1]{0}', space=sflag, size = 0x4, scoped, tag = 'scoped memory for gin_net.2']
    #allocation11 [shape = 'u8[65536]{0}', space=vmem, size = 0x10000, scoped, tag = 'output window, operand 0, single buffered']
    %9 = vsyncpa [#allocation4], 0
    %10 = vsyncpa [#allocation7], 0
    %11 = vsyncpa [#allocation10], 0
    %12 = vsyncpa [#allocation5], 0
    // Predicated region
    $region2: #{gin_net.2} parent=1 // pred_check
      _
    $region3: #{gin_net.2} parent=1 // pred_check_branch
      %14 = sbr.rel (0) target = $region5
    $region4: #{gin_net.2} parent=1 // pred_region
      %s16 = ssub.s32 1024, 1024
      %17 = vsyncadd [#allocation4], %s16
      %s18 = sshll.u32 [#allocation3], 4
      %s19 = int_to_ptr.vmem [resolvable:$true] %s18
      %24 = dma.hbm_to_vmem [thread:$0]  %s0, 1024, %s19, [#allocation4], 64, 64, 4
    $region5: #{gin_net.2} parent=1 // pred_fallthru
      _
    // Predicated region
    $region6: #{gin_net.2} parent=1 // pred_check
      _
    $region7: #{gin_net.2} parent=1 // pred_check_branch
      %26 = sbr.rel (0) target = $region9
    $region8: #{gin_net.2} parent=1 // pred_region
      %s28 = ssub.s32 2048, 2048
      %29 = vsyncadd [#allocation7], %s28
      %s30 = sshll.u32 [#allocation6], 4
      %s31 = int_to_ptr.vmem [resolvable:$true] %s30
      %36 = dma.hbm_to_vmem [thread:$0]  %s1, 2048, %s31, [#allocation7], 128, 128, 8
    $region9: #{gin_net.2} parent=1 // pred_fallthru
      _
    // Predicated region
    $region10: #{gin_net.2} parent=1 // pred_check
      _
    $region11: #{gin_net.2} parent=1 // pred_check_branch
      %38 = sbr.rel (0) target = $region13
    $region12: #{gin_net.2} parent=1 // pred_region
      %s40 = ssub.s32 16, 16
      %41 = vsyncadd [#allocation7], %s40
      %s43 = sshll.u32 [#allocation8], 4
      %s44 = int_to_ptr.vmem [resolvable:$true] %s43
      %46 = dma.hbm_to_vmem [thread:$0]  %s2, 16, %s44, [#allocation7]
    $region13: #{gin_net.2} parent=1 // pred_fallthru
      _
    // Predicated region
    $region14: #{gin_net.2} parent=1 // pred_check
      _
    $region15: #{gin_net.2} parent=1 // pred_check_branch
      %48 = sbr.rel (0) target = $region17
    $region16: #{gin_net.2} parent=1 // pred_region
      %s50 = ssub.s32 2048, 2048
      %51 = vsyncadd [#allocation10], %s50
      %s52 = sshll.u32 [#allocation9], 4
      %s53 = int_to_ptr.vmem [resolvable:$true] %s52
      %58 = dma.hbm_to_vmem [thread:$0]  %s3, 2048, %s53, [#allocation10], 128, 128, 8
    $region17: #{gin_net.2} parent=1 // pred_fallthru
      _
    // Predicated region
    $region18: #{gin_net.2} parent=1 // pred_check
      _
    $region19: #{gin_net.2} parent=1 // pred_check_branch
      %60 = sbr.rel (0) target = $region21
    $region20: #{gin_net.2} parent=1 // pred_region
      %61 = dma.done [#allocation4], 1024
    $region21: #{gin_net.2} parent=1 // pred_fallthru
      _
    // Predicated region
    $region22: #{gin_net.2} parent=1 // pred_check
      _
    $region23: #{gin_net.2} parent=1 // pred_check_branch
      %63 = sbr.rel (0) target = $region25
    $region24: #{gin_net.2} parent=1 // pred_region
      %64 = dma.done [#allocation7], 2048
    $region25: #{gin_net.2} parent=1 // pred_fallthru
      _
    // Predicated region
    $region26: #{gin_net.2} parent=1 // pred_check
      _
    $region27: #{gin_net.2} parent=1 // pred_check_branch
      %66 = sbr.rel (0) target = $region29
    $region28: #{gin_net.2} parent=1 // pred_region
      %67 = dma.done [#allocation7], 16
    $region29: #{gin_net.2} parent=1 // pred_fallthru
      _
    // Predicated region
    $region30: #{gin_net.2} parent=1 // pred_check
      _
    $region31: #{gin_net.2} parent=1 // pred_check_branch
      %69 = sbr.rel (0) target = $region33
    $region32: #{gin_net.2} parent=1 // pred_region
      %70 = dma.done [#allocation10], 2048
    $region33: #{gin_net.2} parent=1 // pred_fallthru
      _
    %p71 = scmp.eq.s32.totalorder 0, 0
    // Predicated region
    $region34: #{gin_net.2} parent=1 // pred_check
      %p72 = pneg %p71
    $region35: #{gin_net.2} parent=1 // pred_check_branch
      %74 = sbr.rel (%p72) target = $region37
    $region36: #{gin_net.2} parent=1 // pred_region
      %75 = vst [vmem:[#allocation2] sm:$0xff] 0.0
      %76 = vst [vmem:[#allocation2 + $0x8] sm:$0xff] 0.0
      %77 = vst [vmem:[#allocation2 + $0x10] sm:$0xff] 0.0
      %78 = vst [vmem:[#allocation2 + $0x18] sm:$0xff] 0.0
      %79 = vst [vmem:[#allocation2 + $0x20] sm:$0xff] 0.0
      %80 = vst [vmem:[#allocation2 + $0x28] sm:$0xff] 0.0
      %81 = vst [vmem:[#allocation2 + $0x30] sm:$0xff] 0.0
      %82 = vst [vmem:[#allocation2 + $0x38] sm:$0xff] 0.0
      %83 = vst [vmem:[#allocation2 + $0x40] sm:$0xff] 0.0
      %84 = vst [vmem:[#allocation2 + $0x48] sm:$0xff] 0.0
      %85 = vst [vmem:[#allocation2 + $0x50] sm:$0xff] 0.0
      %86 = vst [vmem:[#allocation2 + $0x58] sm:$0xff] 0.0
      %87 = vst [vmem:[#allocation2 + $0x60] sm:$0xff] 0.0
      %88 = vst [vmem:[#allocation2 + $0x68] sm:$0xff] 0.0
      %89 = vst [vmem:[#allocation2 + $0x70] sm:$0xff] 0.0
      %90 = vst [vmem:[#allocation2 + $0x78] sm:$0xff] 0.0
    $region37: #{gin_net.2} parent=1 // pred_fallthru
      _
    %s91 = smul.u32 0, 128
    %v92 = vld [vmem:[#allocation2] sm:$0xff]
    %v93 = vld [vmem:[#allocation2 + $0x8] sm:$0xff]
    %v94 = vld [vmem:[#allocation2 + $0x10] sm:$0xff]
    %v95 = vld [vmem:[#allocation2 + $0x18] sm:$0xff]
    %v96 = vld [vmem:[#allocation2 + $0x20] sm:$0xff]
    %v97 = vld [vmem:[#allocation2 + $0x28] sm:$0xff]
    %v98 = vld [vmem:[#allocation2 + $0x30] sm:$0xff]
    %v99 = vld [vmem:[#allocation2 + $0x38] sm:$0xff]
    %v100 = vld [vmem:[#allocation2 + $0x40] sm:$0xff]
    %v101 = vld [vmem:[#allocation2 + $0x48] sm:$0xff]
    %v102 = vld [vmem:[#allocation2 + $0x50] sm:$0xff]
    %v103 = vld [vmem:[#allocation2 + $0x58] sm:$0xff]
    %v104 = vld [vmem:[#allocation2 + $0x60] sm:$0xff]
    %v105 = vld [vmem:[#allocation2 + $0x68] sm:$0xff]
    %v106 = vld [vmem:[#allocation2 + $0x70] sm:$0xff]
    %v107 = vld [vmem:[#allocation2 + $0x78] sm:$0xff]
    %v108 = vld [vmem:[#allocation3] sm:$0xf]
    %v109 = vld [vmem:[#allocation3 + $0x4] sm:$0xf]
    %v110 = vld [vmem:[#allocation3 + $0x8] sm:$0xf]
    %v111 = vld [vmem:[#allocation3 + $0xc] sm:$0xf]
    %v112 = vld [vmem:[#allocation3 + $0x10] sm:$0xf]
    %v113 = vld [vmem:[#allocation3 + $0x14] sm:$0xf]
    %v114 = vld [vmem:[#allocation3 + $0x18] sm:$0xf]
    %v115 = vld [vmem:[#allocation3 + $0x1c] sm:$0xf]
    %v116 = vld [vmem:[#allocation3 + $0x20] sm:$0xf]
    %v117 = vld [vmem:[#allocation3 + $0x24] sm:$0xf]
    %v118 = vld [vmem:[#allocation3 + $0x28] sm:$0xf]
    %v119 = vld [vmem:[#allocation3 + $0x2c] sm:$0xf]
    %v120 = vld [vmem:[#allocation3 + $0x30] sm:$0xf]
    %v121 = vld [vmem:[#allocation3 + $0x34] sm:$0xf]
    %v122 = vld [vmem:[#allocation3 + $0x38] sm:$0xf]
    %v123 = vld [vmem:[#allocation3 + $0x3c] sm:$0xf]
    %v124 = vunpack.c.l.bf16 %v108
    %v125 = vunpack.c.l.bf16 %v109
    %v126 = vunpack.c.l.bf16 %v110
    %v127 = vunpack.c.l.bf16 %v111
    %v128 = vunpack.c.l.bf16 %v112
    %v129 = vunpack.c.l.bf16 %v113
    %v130 = vunpack.c.l.bf16 %v114
    %v131 = vunpack.c.l.bf16 %v115
    %v132 = vunpack.c.l.bf16 %v116
    %v133 = vunpack.c.l.bf16 %v117
    %v134 = vunpack.c.l.bf16 %v118
    %v135 = vunpack.c.l.bf16 %v119
    %v136 = vunpack.c.l.bf16 %v120
    %v137 = vunpack.c.l.bf16 %v121
    %v138 = vunpack.c.l.bf16 %v122
    %v139 = vunpack.c.l.bf16 %v123
    %s140 = scalar_lea.vmem [#allocation6], %s91
    %v141 = vld [vmem:[%s140] sm:$0xff]
    %v142 = vld [vmem:[%s140 + $0x8] sm:$0xff]
    %v143 = vld [vmem:[%s140 + $0x10] sm:$0xff]
    %v144 = vld [vmem:[%s140 + $0x18] sm:$0xff]
    %v145 = vld [vmem:[%s140 + $0x20] sm:$0xff]
    %v146 = vld [vmem:[%s140 + $0x28] sm:$0xff]
    %v147 = vld [vmem:[%s140 + $0x30] sm:$0xff]
    %v148 = vld [vmem:[%s140 + $0x38] sm:$0xff]
    %v149 = vld [vmem:[%s140 + $0x40] sm:$0xff]
    %v150 = vld [vmem:[%s140 + $0x48] sm:$0xff]
    %v151 = vld [vmem:[%s140 + $0x50] sm:$0xff]
    %v152 = vld [vmem:[%s140 + $0x58] sm:$0xff]
    %v153 = vld [vmem:[%s140 + $0x60] sm:$0xff]
    %v154 = vld [vmem:[%s140 + $0x68] sm:$0xff]
    %v155 = vld [vmem:[%s140 + $0x70] sm:$0xff]
    %v156 = vld [vmem:[%s140 + $0x78] sm:$0xff]
    %157 = vmatprep.subr.mxu0 0.0
    %158 = vmatpush1.msra.mxu0 %v141
    %159 = vmatprep.subr.mxu0 0.0
    %160 = vmatpush1.msra.mxu0 %v142
    %161 = vmatprep.subr.mxu0 0.0
    %162 = vmatpush1.msra.mxu0 %v143
    %163 = vmatprep.subr.mxu0 0.0
    %164 = vmatpush1.msra.mxu0 %v144
    %165 = vmatprep.subr.mxu0 0.0
    %166 = vmatpush1.msra.mxu0 %v145
    %167 = vmatprep.subr.mxu0 0.0
    %168 = vmatpush1.msra.mxu0 %v146
    %169 = vmatprep.subr.mxu0 0.0
    %170 = vmatpush1.msra.mxu0 %v147
    %171 = vmatprep.subr.mxu0 0.0
    %172 = vmatpush1.msra.mxu0 %v148
    %173 = vmatprep.subr.mxu0 0.0
    %174 = vmatpush1.msra.mxu0 %v149
    %175 = vmatprep.subr.mxu0 0.0
    %176 = vmatpush1.msra.mxu0 %v150
    %177 = vmatprep.subr.mxu0 0.0
    %178 = vmatpush1.msra.mxu0 %v151
    %179 = vmatprep.subr.mxu0 0.0
    %180 = vmatpush1.msra.mxu0 %v152
    %181 = vmatprep.subr.mxu0 0.0
    %182 = vmatpush1.msra.mxu0 %v153
    %183 = vmatprep.subr.mxu0 0.0
    %184 = vmatpush1.msra.mxu0 %v154
    %185 = vmatprep.subr.mxu0 0.0
    %186 = vmatpush1.msra.mxu0 %v155
    %187 = vmatprep.subr.mxu0 0.0
    %188 = vmatpush1.msra.mxu0 %v156
    %189 = vmatprep.subr.mxu0 0.0
    %190 = vmatpush1.msra.mxu0 0.0
    %191 = vmatprep.subr.mxu0 0.0
    %192 = vmatpush1.msra.mxu0 0.0
    %193 = vmatprep.subr.mxu0 0.0
    %194 = vmatpush1.msra.mxu0 0.0
    %195 = vmatprep.subr.mxu0 0.0
    %196 = vmatpush1.msra.mxu0 0.0
    %197 = vmatprep.subr.mxu0 0.0
    %198 = vmatpush1.msra.mxu0 0.0
    %199 = vmatprep.subr.mxu0 0.0
    %200 = vmatpush1.msra.mxu0 0.0
    %201 = vmatprep.subr.mxu0 0.0
    %202 = vmatpush1.msra.mxu0 0.0
    %203 = vmatprep.subr.mxu0 0.0
    %204 = vmatpush1.msra.mxu0 0.0
    %205 = vmatprep.subr.mxu0 0.0
    %206 = vmatpush1.msra.mxu0 0.0
    %207 = vmatprep.subr.mxu0 0.0
    %208 = vmatpush1.msra.mxu0 0.0
    %209 = vmatprep.subr.mxu0 0.0
    %210 = vmatpush1.msra.mxu0 0.0
    %211 = vmatprep.subr.mxu0 0.0
    %212 = vmatpush1.msra.mxu0 0.0
    %213 = vmatprep.subr.mxu0 0.0
    %214 = vmatpush1.msra.mxu0 0.0
    %215 = vmatprep.subr.mxu0 0.0
    %216 = vmatpush1.msra.mxu0 0.0
    %217 = vmatprep.subr.mxu0 0.0
    %218 = vmatpush1.msra.mxu0 0.0
    %219 = vmatprep.subr.mxu0 0.0
    %220 = vmatpush1.msra.mxu0 0.0
    %221 = vmatprep.mubr.f32.mxu0 0.0
    %222 = vmatmul.mubr.f32.gmra.mrb[0].mxu0 %v124
    %v223 = vpop.f32.mrb[0].mxu0
    %v224 = vadd.f32 0.0, %v223
    %v225 = vpop.f32.mrb[0].mxu0
    %226 = vmatprep.mubr.f32.mxu0 0.0
    %227 = vmatmul.mubr.f32.gmra.mrb[0].mxu0 %v125
    %v228 = vpop.f32.mrb[0].mxu0
    %v229 = vadd.f32 0.0, %v228
    %v230 = vpop.f32.mrb[0].mxu0
    %231 = vmatprep.mubr.f32.mxu0 0.0
    %232 = vmatmul.mubr.f32.gmra.mrb[0].mxu0 %v126
    %v233 = vpop.f32.mrb[0].mxu0
    %v234 = vadd.f32 0.0, %v233
    %v235 = vpop.f32.mrb[0].mxu0
    %236 = vmatprep.mubr.f32.mxu0 0.0
    %237 = vmatmul.mubr.f32.gmra.mrb[0].mxu0 %v127
    %v238 = vpop.f32.mrb[0].mxu0
    %v239 = vadd.f32 0.0, %v238
    %v240 = vpop.f32.mrb[0].mxu0
    %241 = vmatprep.mubr.f32.mxu0 0.0
    %242 = vmatmul.mubr.f32.gmra.mrb[0].mxu0 %v128
    %v243 = vpop.f32.mrb[0].mxu0
    %v244 = vadd.f32 0.0, %v243
    %v245 = vpop.f32.mrb[0].mxu0
    %246 = vmatprep.mubr.f32.mxu0 0.0
    %247 = vmatmul.mubr.f32.gmra.mrb[0].mxu0 %v129
    %v248 = vpop.f32.mrb[0].mxu0
    %v249 = vadd.f32 0.0, %v248
    %v250 = vpop.f32.mrb[0].mxu0
    %251 = vmatprep.mubr.f32.mxu0 0.0
    %252 = vmatmul.mubr.f32.gmra.mrb[0].mxu0 %v130
    %v253 = vpop.f32.mrb[0].mxu0
    %v254 = vadd.f32 0.0, %v253
    %v255 = vpop.f32.mrb[0].mxu0
    %256 = vmatprep.mubr.f32.mxu0 0.0
    %257 = vmatmul.mubr.f32.gmra.mrb[0].mxu0 %v131
    %v258 = vpop.f32.mrb[0].mxu0
    %v259 = vadd.f32 0.0, %v258
    %v260 = vpop.f32.mrb[0].mxu0
    %261 = vmatprep.mubr.f32.mxu0 0.0
    %262 = vmatmul.mubr.f32.gmra.mrb[0].mxu0 %v132
    %v263 = vpop.f32.mrb[0].mxu0
    %v264 = vadd.f32 0.0, %v263
    %v265 = vpop.f32.mrb[0].mxu0
    %266 = vmatprep.mubr.f32.mxu0 0.0
    %267 = vmatmul.mubr.f32.gmra.mrb[0].mxu0 %v133
    %v268 = vpop.f32.mrb[0].mxu0
    %v269 = vadd.f32 0.0, %v268
    %v270 = vpop.f32.mrb[0].mxu0
    %271 = vmatprep.mubr.f32.mxu0 0.0
    %272 = vmatmul.mubr.f32.gmra.mrb[0].mxu0 %v134
    %v273 = vpop.f32.mrb[0].mxu0
    %v274 = vadd.f32 0.0, %v273
    %v275 = vpop.f32.mrb[0].mxu0
    %276 = vmatprep.mubr.f32.mxu0 0.0
    %277 = vmatmul.mubr.f32.gmra.mrb[0].mxu0 %v135
    %v278 = vpop.f32.mrb[0].mxu0
    %v279 = vadd.f32 0.0, %v278
    %v280 = vpop.f32.mrb[0].mxu0
    %281 = vmatprep.mubr.f32.mxu0 0.0
    %282 = vmatmul.mubr.f32.gmra.mrb[0].mxu0 %v136
    %v283 = vpop.f32.mrb[0].mxu0
    %v284 = vadd.f32 0.0, %v283
    %v285 = vpop.f32.mrb[0].mxu0
    %286 = vmatprep.mubr.f32.mxu0 0.0
    %287 = vmatmul.mubr.f32.gmra.mrb[0].mxu0 %v137
    %v288 = vpop.f32.mrb[0].mxu0
    %v289 = vadd.f32 0.0, %v288
    %v290 = vpop.f32.mrb[0].mxu0
    %291 = vmatprep.mubr.f32.mxu0 0.0
    %292 = vmatmul.mubr.f32.gmra.mrb[0].mxu0 %v138
    %v293 = vpop.f32.mrb[0].mxu0
    %v294 = vadd.f32 0.0, %v293
    %v295 = vpop.f32.mrb[0].mxu0
    %296 = vmatprep.mubr.f32.mxu0 0.0
    %297 = vmatmul.mubr.f32.gmra.mrb[0].mxu0 %v139
    %v298 = vpop.f32.mrb[0].mxu0
    %v299 = vadd.f32 0.0, %v298
    %v300 = vpop.f32.mrb[0].mxu0
    %301 = vdwg.mxu0
    %v302 = vadd.f32 %v92, %v224
    %v303 = vadd.f32 %v93, %v229
    %v304 = vadd.f32 %v94, %v234
    %v305 = vadd.f32 %v95, %v239
    %v306 = vadd.f32 %v96, %v244
    %v307 = vadd.f32 %v97, %v249
    %v308 = vadd.f32 %v98, %v254
    %v309 = vadd.f32 %v99, %v259
    %v310 = vadd.f32 %v100, %v264
    %v311 = vadd.f32 %v101, %v269
    %v312 = vadd.f32 %v102, %v274
    %v313 = vadd.f32 %v103, %v279
    %v314 = vadd.f32 %v104, %v284
    %v315 = vadd.f32 %v105, %v289
    %v316 = vadd.f32 %v106, %v294
    %v317 = vadd.f32 %v107, %v299
    %318 = vst [vmem:[#allocation2] sm:$0xff] %v302
    %319 = vst [vmem:[#allocation2 + $0x8] sm:$0xff] %v303
    %320 = vst [vmem:[#allocation2 + $0x10] sm:$0xff] %v304
    %321 = vst [vmem:[#allocation2 + $0x18] sm:$0xff] %v305
    %322 = vst [vmem:[#allocation2 + $0x20] sm:$0xff] %v306
    %323 = vst [vmem:[#allocation2 + $0x28] sm:$0xff] %v307
    %324 = vst [vmem:[#allocation2 + $0x30] sm:$0xff] %v308
    %325 = vst [vmem:[#allocation2 + $0x38] sm:$0xff] %v309
    %326 = vst [vmem:[#allocation2 + $0x40] sm:$0xff] %v310
    %327 = vst [vmem:[#allocation2 + $0x48] sm:$0xff] %v311
    %328 = vst [vmem:[#allocation2 + $0x50] sm:$0xff] %v312
    %329 = vst [vmem:[#allocation2 + $0x58] sm:$0xff] %v313
    %330 = vst [vmem:[#allocation2 + $0x60] sm:$0xff] %v314
    %331 = vst [vmem:[#allocation2 + $0x68] sm:$0xff] %v315
    %332 = vst [vmem:[#allocation2 + $0x70] sm:$0xff] %v316
    %333 = vst [vmem:[#allocation2 + $0x78] sm:$0xff] %v317
    // Predicated region
    $region38: #{gin_net.2} parent=1 // pred_check
      %p334 = pneg %p71
    $region39: #{gin_net.2} parent=1 // pred_check_branch
      %336 = sbr.rel (%p334) target = $region41
    $region40: #{gin_net.2} parent=1 // pred_region
      %v337 = vld [vmem:[#allocation2] sm:$0xff]
      %v338 = vld [vmem:[#allocation2 + $0x8] sm:$0xff]
      %v339 = vld [vmem:[#allocation2 + $0x10] sm:$0xff]
      %v340 = vld [vmem:[#allocation2 + $0x18] sm:$0xff]
      %v341 = vld [vmem:[#allocation2 + $0x20] sm:$0xff]
      %v342 = vld [vmem:[#allocation2 + $0x28] sm:$0xff]
      %v343 = vld [vmem:[#allocation2 + $0x30] sm:$0xff]
      %v344 = vld [vmem:[#allocation2 + $0x38] sm:$0xff]
      %v345 = vld [vmem:[#allocation2 + $0x40] sm:$0xff]
      %v346 = vld [vmem:[#allocation2 + $0x48] sm:$0xff]
      %v347 = vld [vmem:[#allocation2 + $0x50] sm:$0xff]
      %v348 = vld [vmem:[#allocation2 + $0x58] sm:$0xff]
      %v349 = vld [vmem:[#allocation2 + $0x60] sm:$0xff]
      %v350 = vld [vmem:[#allocation2 + $0x68] sm:$0xff]
      %v351 = vld [vmem:[#allocation2 + $0x70] sm:$0xff]
      %v352 = vld [vmem:[#allocation2 + $0x78] sm:$0xff]
      %v353 = vld [vmem:[#allocation8] sm:$0x1]
      %v355 = vlaneseq
      %v356 = vshrl.u32 %v355, 7
      %v357 = vsub.s32 0, %v356
      %v358 = vrot.slane %v353, %v357
      %v360 = vadd.f32 %v337, %v358
      %v361 = vadd.f32 %v338, %v358
      %v362 = vadd.f32 %v339, %v358
      %v363 = vadd.f32 %v340, %v358
      %v364 = vadd.f32 %v341, %v358
      %v365 = vadd.f32 %v342, %v358
      %v366 = vadd.f32 %v343, %v358
      %v367 = vadd.f32 %v344, %v358
      %v368 = vadd.f32 %v345, %v358
      %v369 = vadd.f32 %v346, %v358
      %v370 = vadd.f32 %v347, %v358
      %v371 = vadd.f32 %v348, %v358
      %v372 = vadd.f32 %v349, %v358
      %v373 = vadd.f32 %v350, %v358
      %v374 = vadd.f32 %v351, %v358
      %v375 = vadd.f32 %v352, %v358
      %v376 = vmax.f32 %v360, 0.0
      %v377 = vmax.f32 %v361, 0.0
      %v378 = vmax.f32 %v362, 0.0
      %v379 = vmax.f32 %v363, 0.0
      %v380 = vmax.f32 %v364, 0.0
      %v381 = vmax.f32 %v365, 0.0
      %v382 = vmax.f32 %v366, 0.0
      %v383 = vmax.f32 %v367, 0.0
      %v384 = vmax.f32 %v368, 0.0
      %v385 = vmax.f32 %v369, 0.0
      %v386 = vmax.f32 %v370, 0.0
      %v387 = vmax.f32 %v371, 0.0
      %v388 = vmax.f32 %v372, 0.0
      %v389 = vmax.f32 %v373, 0.0
      %v390 = vmax.f32 %v374, 0.0
      %v391 = vmax.f32 %v375, 0.0
      %v392 = vld [vmem:[#allocation9] sm:$0xff]
      %v393 = vld [vmem:[#allocation9 + $0x8] sm:$0xff]
      %v394 = vld [vmem:[#allocation9 + $0x10] sm:$0xff]
      %v395 = vld [vmem:[#allocation9 + $0x18] sm:$0xff]
      %v396 = vld [vmem:[#allocation9 + $0x20] sm:$0xff]
      %v397 = vld [vmem:[#allocation9 + $0x28] sm:$0xff]
      %v398 = vld [vmem:[#allocation9 + $0x30] sm:$0xff]
      %v399 = vld [vmem:[#allocation9 + $0x38] sm:$0xff]
      %v400 = vld [vmem:[#allocation9 + $0x40] sm:$0xff]
      %v401 = vld [vmem:[#allocation9 + $0x48] sm:$0xff]
      %v402 = vld [vmem:[#allocation9 + $0x50] sm:$0xff]
      %v403 = vld [vmem:[#allocation9 + $0x58] sm:$0xff]
      %v404 = vld [vmem:[#allocation9 + $0x60] sm:$0xff]
      %v405 = vld [vmem:[#allocation9 + $0x68] sm:$0xff]
      %v406 = vld [vmem:[#allocation9 + $0x70] sm:$0xff]
      %v407 = vld [vmem:[#allocation9 + $0x78] sm:$0xff]
      %408 = vmatprep.subr.mxu0 0.0
      %409 = vmatpush1.msra.mxu0 %v392
      %410 = vmatprep.subr.mxu0 0.0
      %411 = vmatpush1.msra.mxu0 %v393
      %412 = vmatprep.subr.mxu0 0.0
      %413 = vmatpush1.msra.mxu0 %v394
      %414 = vmatprep.subr.mxu0 0.0
      %415 = vmatpush1.msra.mxu0 %v395
      %416 = vmatprep.subr.mxu0 0.0
      %417 = vmatpush1.msra.mxu0 %v396
      %418 = vmatprep.subr.mxu0 0.0
      %419 = vmatpush1.msra.mxu0 %v397
      %420 = vmatprep.subr.mxu0 0.0
      %421 = vmatpush1.msra.mxu0 %v398
      %422 = vmatprep.subr.mxu0 0.0
      %423 = vmatpush1.msra.mxu0 %v399
      %424 = vmatprep.subr.mxu0 0.0
      %425 = vmatpush1.msra.mxu0 %v400
      %426 = vmatprep.subr.mxu0 0.0
      %427 = vmatpush1.msra.mxu0 %v401
      %428 = vmatprep.subr.mxu0 0.0
      %429 = vmatpush1.msra.mxu0 %v402
      %430 = vmatprep.subr.mxu0 0.0
      %431 = vmatpush1.msra.mxu0 %v403
      %432 = vmatprep.subr.mxu0 0.0
      %433 = vmatpush1.msra.mxu0 %v404
      %434 = vmatprep.subr.mxu0 0.0
      %435 = vmatpush1.msra.mxu0 %v405
      %436 = vmatprep.subr.mxu0 0.0
      %437 = vmatpush1.msra.mxu0 %v406
      %438 = vmatprep.subr.mxu0 0.0
      %439 = vmatpush1.msra.mxu0 %v407
      %440 = vmatprep.subr.mxu0 0.0
      %441 = vmatpush1.msra.mxu0 0.0
      %442 = vmatprep.subr.mxu0 0.0
      %443 = vmatpush1.msra.mxu0 0.0
      %444 = vmatprep.subr.mxu0 0.0
      %445 = vmatpush1.msra.mxu0 0.0
      %446 = vmatprep.subr.mxu0 0.0
      %447 = vmatpush1.msra.mxu0 0.0
      %448 = vmatprep.subr.mxu0 0.0
      %449 = vmatpush1.msra.mxu0 0.0
      %450 = vmatprep.subr.mxu0 0.0
      %451 = vmatpush1.msra.mxu0 0.0
      %452 = vmatprep.subr.mxu0 0.0
      %453 = vmatpush1.msra.mxu0 0.0
      %454 = vmatprep.subr.mxu0 0.0
      %455 = vmatpush1.msra.mxu0 0.0
      %456 = vmatprep.subr.mxu0 0.0
      %457 = vmatpush1.msra.mxu0 0.0
      %458 = vmatprep.subr.mxu0 0.0
      %459 = vmatpush1.msra.mxu0 0.0
      %460 = vmatprep.subr.mxu0 0.0
      %461 = vmatpush1.msra.mxu0 0.0
      %462 = vmatprep.subr.mxu0 0.0
      %463 = vmatpush1.msra.mxu0 0.0
      %464 = vmatprep.subr.mxu0 0.0
      %465 = vmatpush1.msra.mxu0 0.0
      %466 = vmatprep.subr.mxu0 0.0
      %467 = vmatpush1.msra.mxu0 0.0
      %468 = vmatprep.subr.mxu0 0.0
      %469 = vmatpush1.msra.mxu0 0.0
      %470 = vmatprep.subr.mxu0 0.0
      %471 = vmatpush1.msra.mxu0 0.0
      %472 = vmatprep.mubr.f32.mxu0 0.0
      %473 = vmatmul.mubr.f32.gmra.mrb[0].mxu0 %v376
      %v474 = vpop.f32.mrb[0].mxu0
      %v475 = vadd.f32 0.0, %v474
      %v476 = vpop.f32.mrb[0].mxu0
      %477 = vmatprep.mubr.f32.mxu0 0.0
      %478 = vmatmul.mubr.f32.gmra.mrb[0].mxu0 %v377
      %v479 = vpop.f32.mrb[0].mxu0
      %v480 = vadd.f32 0.0, %v479
      %v481 = vpop.f32.mrb[0].mxu0
      %482 = vmatprep.mubr.f32.mxu0 0.0
      %483 = vmatmul.mubr.f32.gmra.mrb[0].mxu0 %v378
      %v484 = vpop.f32.mrb[0].mxu0
      %v485 = vadd.f32 0.0, %v484
      %v486 = vpop.f32.mrb[0].mxu0
      %487 = vmatprep.mubr.f32.mxu0 0.0
      %488 = vmatmul.mubr.f32.gmra.mrb[0].mxu0 %v379
      %v489 = vpop.f32.mrb[0].mxu0
      %v490 = vadd.f32 0.0, %v489
      %v491 = vpop.f32.mrb[0].mxu0
      %492 = vmatprep.mubr.f32.mxu0 0.0
      %493 = vmatmul.mubr.f32.gmra.mrb[0].mxu0 %v380
      %v494 = vpop.f32.mrb[0].mxu0
      %v495 = vadd.f32 0.0, %v494
      %v496 = vpop.f32.mrb[0].mxu0
      %497 = vmatprep.mubr.f32.mxu0 0.0
      %498 = vmatmul.mubr.f32.gmra.mrb[0].mxu0 %v381
      %v499 = vpop.f32.mrb[0].mxu0
      %v500 = vadd.f32 0.0, %v499
      %v501 = vpop.f32.mrb[0].mxu0
      %502 = vmatprep.mubr.f32.mxu0 0.0
      %503 = vmatmul.mubr.f32.gmra.mrb[0].mxu0 %v382
      %v504 = vpop.f32.mrb[0].mxu0
      %v505 = vadd.f32 0.0, %v504
      %v506 = vpop.f32.mrb[0].mxu0
      %507 = vmatprep.mubr.f32.mxu0 0.0
      %508 = vmatmul.mubr.f32.gmra.mrb[0].mxu0 %v383
      %v509 = vpop.f32.mrb[0].mxu0
      %v510 = vadd.f32 0.0, %v509
      %v511 = vpop.f32.mrb[0].mxu0
      %512 = vmatprep.mubr.f32.mxu0 0.0
      %513 = vmatmul.mubr.f32.gmra.mrb[0].mxu0 %v384
      %v514 = vpop.f32.mrb[0].mxu0
      %v515 = vadd.f32 0.0, %v514
      %v516 = vpop.f32.mrb[0].mxu0
      %517 = vmatprep.mubr.f32.mxu0 0.0
      %518 = vmatmul.mubr.f32.gmra.mrb[0].mxu0 %v385
      %v519 = vpop.f32.mrb[0].mxu0
      %v520 = vadd.f32 0.0, %v519
      %v521 = vpop.f32.mrb[0].mxu0
      %522 = vmatprep.mubr.f32.mxu0 0.0
      %523 = vmatmul.mubr.f32.gmra.mrb[0].mxu0 %v386
      %v524 = vpop.f32.mrb[0].mxu0
      %v525 = vadd.f32 0.0, %v524
      %v526 = vpop.f32.mrb[0].mxu0
      %527 = vmatprep.mubr.f32.mxu0 0.0
      %528 = vmatmul.mubr.f32.gmra.mrb[0].mxu0 %v387
      %v529 = vpop.f32.mrb[0].mxu0
      %v530 = vadd.f32 0.0, %v529
      %v531 = vpop.f32.mrb[0].mxu0
      %532 = vmatprep.mubr.f32.mxu0 0.0
      %533 = vmatmul.mubr.f32.gmra.mrb[0].mxu0 %v388
      %v534 = vpop.f32.mrb[0].mxu0
      %v535 = vadd.f32 0.0, %v534
      %v536 = vpop.f32.mrb[0].mxu0
      %537 = vmatprep.mubr.f32.mxu0 0.0
      %538 = vmatmul.mubr.f32.gmra.mrb[0].mxu0 %v389
      %v539 = vpop.f32.mrb[0].mxu0
      %v540 = vadd.f32 0.0, %v539
      %v541 = vpop.f32.mrb[0].mxu0
      %542 = vmatprep.mubr.f32.mxu0 0.0
      %543 = vmatmul.mubr.f32.gmra.mrb[0].mxu0 %v390
      %v544 = vpop.f32.mrb[0].mxu0
      %v545 = vadd.f32 0.0, %v544
      %v546 = vpop.f32.mrb[0].mxu0
      %547 = vmatprep.mubr.f32.mxu0 0.0
      %548 = vmatmul.mubr.f32.gmra.mrb[0].mxu0 %v391
      %v549 = vpop.f32.mrb[0].mxu0
      %v550 = vadd.f32 0.0, %v549
      %v551 = vpop.f32.mrb[0].mxu0
      %552 = vdwg.mxu0
      %553 = vst [vmem:[#allocation11] sm:$0xff] %v475
      %554 = vst [vmem:[#allocation11 + $0x8] sm:$0xff] %v480
      %555 = vst [vmem:[#allocation11 + $0x10] sm:$0xff] %v485
      %556 = vst [vmem:[#allocation11 + $0x18] sm:$0xff] %v490
      %557 = vst [vmem:[#allocation11 + $0x20] sm:$0xff] %v495
      %558 = vst [vmem:[#allocation11 + $0x28] sm:$0xff] %v500
      %559 = vst [vmem:[#allocation11 + $0x30] sm:$0xff] %v505
      %560 = vst [vmem:[#allocation11 + $0x38] sm:$0xff] %v510
      %561 = vst [vmem:[#allocation11 + $0x40] sm:$0xff] %v515
      %562 = vst [vmem:[#allocation11 + $0x48] sm:$0xff] %v520
      %563 = vst [vmem:[#allocation11 + $0x50] sm:$0xff] %v525
      %564 = vst [vmem:[#allocation11 + $0x58] sm:$0xff] %v530
      %565 = vst [vmem:[#allocation11 + $0x60] sm:$0xff] %v535
      %566 = vst [vmem:[#allocation11 + $0x68] sm:$0xff] %v540
      %567 = vst [vmem:[#allocation11 + $0x70] sm:$0xff] %v545
      %568 = vst [vmem:[#allocation11 + $0x78] sm:$0xff] %v550
    $region41: #{gin_net.2} parent=1 // pred_fallthru
      _
    // Predicated region
    $region42: #{gin_net.2} parent=1 // pred_check
      _
    $region43: #{gin_net.2} parent=1 // pred_check_branch
      %570 = sbr.rel (0) target = $region45
    $region44: #{gin_net.2} parent=1 // pred_region
      %s572 = ssub.s32 2048, 2048
      %573 = vsyncadd [#allocation5], %s572
      %s574 = sshll.u32 [#allocation11], 4
      %s575 = int_to_ptr.vmem [resolvable:$true] %s574
      %580 = dma.vmem_to_hbm [thread:$0]  %s575, 2048, %s4, [#allocation5], 128, 128, 8
    $region45: #{gin_net.2} parent=1 // pred_fallthru
      _
    // Predicated region
    $region46: #{gin_net.2} parent=1 // pred_check
      _
    $region47: #{gin_net.2} parent=1 // pred_check_branch
      %582 = sbr.rel (0) target = $region49
    $region48: #{gin_net.2} parent=1 // pred_region
      %583 = dma.done [#allocation5], 2048
    $region49: #{gin_net.2} parent=1 // pred_fallthru
      _
    %584 = vsyncpa [#allocation4], 1
    %585 = vsyncpa [#allocation7], 1
    %586 = vsyncpa [#allocation10], 1
    %587 = vsyncpa [#allocation5], 1

// kernel: gin_net.3
$region0: #{gin_net.3}
  #allocation0 [shape = 'u32[]', space=smem, size = 0x4, offset = 0x4, fixed_abs, tag = 'smem constant byte address 0x4 - core index']
  #allocation1 [shape = 'u32[144,128]{1,0:T(1,128)}', space=vmem, size = 0x12000, scoped, tag = 'internal scratch']
  %s0 = inlined_call_operand.hbm [shape: bf16[128,128], index: 0, kind: input, shape index: {}]
  %s1 = inlined_call_operand.hbm [shape: f32[128,128], index: 1, kind: input, shape index: {}]
  %s2 = inlined_call_operand.hbm [shape: f32[1,128], index: 2, kind: input, shape index: {}]
  %s3 = inlined_call_operand.hbm [shape: f32[128,128], index: 3, kind: output, shape index: {}]
  %s4 = sld [smem:[#allocation0]]
  $region42: #{gin_net.3} parent=0
    _
  %s6 = ssub.s32 1, %s4
  %s7 = scalar_select 0, %s6, %s4
  $region1: #{gin_net.3} parent=0
    #allocation2 [shape = 'u8[32768]{0}', space=vmem, size = 0x8000, scoped, tag = 'input window, operand 0, single buffered']
    #allocation3 [shape = 's32[1]{0}', space=sflag, size = 0x4, scoped, tag = 'scoped memory for gin_net.3']
    #allocation4 [shape = 's32[1]{0}', space=sflag, size = 0x4, scoped, tag = 'scoped memory for gin_net.3']
    #allocation5 [shape = 'u8[65536]{0}', space=vmem, size = 0x10000, scoped, tag = 'input window, operand 1, single buffered']
    #allocation6 [shape = 's32[1]{0}', space=sflag, size = 0x4, scoped, tag = 'scoped memory for gin_net.3']
    #allocation7 [shape = 'u8[512]{0}', space=vmem, size = 0x400, scoped, tag = 'input window, operand 2, single buffered']
    #allocation8 [shape = 'u8[65536]{0}', space=vmem, size = 0x10000, scoped, tag = 'output window, operand 0, single buffered']
    %8 = vsyncpa [#allocation3], 0
    %9 = vsyncpa [#allocation6], 0
    %10 = vsyncpa [#allocation4], 0
    // Predicated region
    $region2: #{gin_net.3} parent=1 // pred_check
      _
    $region3: #{gin_net.3} parent=1 // pred_check_branch
      %12 = sbr.rel (0) target = $region5
    $region4: #{gin_net.3} parent=1 // pred_region
      %s14 = ssub.s32 1024, 1024
      %15 = vsyncadd [#allocation3], %s14
      %s16 = sshll.u32 [#allocation2], 4
      %s17 = int_to_ptr.vmem [resolvable:$true] %s16
      %22 = dma.hbm_to_vmem [thread:$0]  %s0, 1024, %s17, [#allocation3], 64, 64, 4
    $region5: #{gin_net.3} parent=1 // pred_fallthru
      _
    // Predicated region
    $region6: #{gin_net.3} parent=1 // pred_check
      _
    $region7: #{gin_net.3} parent=1 // pred_check_branch
      %24 = sbr.rel (0) target = $region9
    $region8: #{gin_net.3} parent=1 // pred_region
      %s26 = ssub.s32 2048, 2048
      %27 = vsyncadd [#allocation6], %s26
      %s28 = sshll.u32 [#allocation5], 4
      %s29 = int_to_ptr.vmem [resolvable:$true] %s28
      %34 = dma.hbm_to_vmem [thread:$0]  %s1, 2048, %s29, [#allocation6], 128, 128, 8
    $region9: #{gin_net.3} parent=1 // pred_fallthru
      _
    // Predicated region
    $region10: #{gin_net.3} parent=1 // pred_check
      _
    $region11: #{gin_net.3} parent=1 // pred_check_branch
      %36 = sbr.rel (0) target = $region13
    $region12: #{gin_net.3} parent=1 // pred_region
      %s38 = ssub.s32 16, 16
      %39 = vsyncadd [#allocation6], %s38
      %s41 = sshll.u32 [#allocation7], 4
      %s42 = int_to_ptr.vmem [resolvable:$true] %s41
      %44 = dma.hbm_to_vmem [thread:$0]  %s2, 16, %s42, [#allocation6]
    $region13: #{gin_net.3} parent=1 // pred_fallthru
      _
    // Predicated region
    $region14: #{gin_net.3} parent=1 // pred_check
      _
    $region15: #{gin_net.3} parent=1 // pred_check_branch
      %46 = sbr.rel (0) target = $region17
    $region16: #{gin_net.3} parent=1 // pred_region
      %47 = dma.done [#allocation3], 1024
    $region17: #{gin_net.3} parent=1 // pred_fallthru
      _
    // Predicated region
    $region18: #{gin_net.3} parent=1 // pred_check
      _
    $region19: #{gin_net.3} parent=1 // pred_check_branch
      %49 = sbr.rel (0) target = $region21
    $region20: #{gin_net.3} parent=1 // pred_region
      %50 = dma.done [#allocation6], 2048
    $region21: #{gin_net.3} parent=1 // pred_fallthru
      _
    // Predicated region
    $region22: #{gin_net.3} parent=1 // pred_check
      _
    $region23: #{gin_net.3} parent=1 // pred_check_branch
      %52 = sbr.rel (0) target = $region25
    $region24: #{gin_net.3} parent=1 // pred_region
      %53 = dma.done [#allocation6], 16
    $region25: #{gin_net.3} parent=1 // pred_fallthru
      _
    %p54 = scmp.eq.s32.totalorder 0, 0
    // Predicated region
    $region26: #{gin_net.3} parent=1 // pred_check
      %p55 = pneg %p54
    $region27: #{gin_net.3} parent=1 // pred_check_branch
      %57 = sbr.rel (%p55) target = $region29
    $region28: #{gin_net.3} parent=1 // pred_region
      %58 = vst [vmem:[#allocation8] sm:$0xff] 0.0
      %59 = vst [vmem:[#allocation8 + $0x8] sm:$0xff] 0.0
      %60 = vst [vmem:[#allocation8 + $0x10] sm:$0xff] 0.0
      %61 = vst [vmem:[#allocation8 + $0x18] sm:$0xff] 0.0
      %62 = vst [vmem:[#allocation8 + $0x20] sm:$0xff] 0.0
      %63 = vst [vmem:[#allocation8 + $0x28] sm:$0xff] 0.0
      %64 = vst [vmem:[#allocation8 + $0x30] sm:$0xff] 0.0
      %65 = vst [vmem:[#allocation8 + $0x38] sm:$0xff] 0.0
      %66 = vst [vmem:[#allocation8 + $0x40] sm:$0xff] 0.0
      %67 = vst [vmem:[#allocation8 + $0x48] sm:$0xff] 0.0
      %68 = vst [vmem:[#allocation8 + $0x50] sm:$0xff] 0.0
      %69 = vst [vmem:[#allocation8 + $0x58] sm:$0xff] 0.0
      %70 = vst [vmem:[#allocation8 + $0x60] sm:$0xff] 0.0
      %71 = vst [vmem:[#allocation8 + $0x68] sm:$0xff] 0.0
      %72 = vst [vmem:[#allocation8 + $0x70] sm:$0xff] 0.0
      %73 = vst [vmem:[#allocation8 + $0x78] sm:$0xff] 0.0
    $region29: #{gin_net.3} parent=1 // pred_fallthru
      _
    %s74 = smul.u32 0, 128
    %v75 = vld [vmem:[#allocation8] sm:$0xff]
    %v76 = vld [vmem:[#allocation8 + $0x8] sm:$0xff]
    %v77 = vld [vmem:[#allocation8 + $0x10] sm:$0xff]
    %v78 = vld [vmem:[#allocation8 + $0x18] sm:$0xff]
    %v79 = vld [vmem:[#allocation8 + $0x20] sm:$0xff]
    %v80 = vld [vmem:[#allocation8 + $0x28] sm:$0xff]
    %v81 = vld [vmem:[#allocation8 + $0x30] sm:$0xff]
    %v82 = vld [vmem:[#allocation8 + $0x38] sm:$0xff]
    %v83 = vld [vmem:[#allocation8 + $0x40] sm:$0xff]
    %v84 = vld [vmem:[#allocation8 + $0x48] sm:$0xff]
    %v85 = vld [vmem:[#allocation8 + $0x50] sm:$0xff]
    %v86 = vld [vmem:[#allocation8 + $0x58] sm:$0xff]
    %v87 = vld [vmem:[#allocation8 + $0x60] sm:$0xff]
    %v88 = vld [vmem:[#allocation8 + $0x68] sm:$0xff]
    %v89 = vld [vmem:[#allocation8 + $0x70] sm:$0xff]
    %v90 = vld [vmem:[#allocation8 + $0x78] sm:$0xff]
    %v91 = vld [vmem:[#allocation2] sm:$0xf]
    %v92 = vld [vmem:[#allocation2 + $0x4] sm:$0xf]
    %v93 = vld [vmem:[#allocation2 + $0x8] sm:$0xf]
    %v94 = vld [vmem:[#allocation2 + $0xc] sm:$0xf]
    %v95 = vld [vmem:[#allocation2 + $0x10] sm:$0xf]
    %v96 = vld [vmem:[#allocation2 + $0x14] sm:$0xf]
    %v97 = vld [vmem:[#allocation2 + $0x18] sm:$0xf]
    %v98 = vld [vmem:[#allocation2 + $0x1c] sm:$0xf]
    %v99 = vld [vmem:[#allocation2 + $0x20] sm:$0xf]
    %v100 = vld [vmem:[#allocation2 + $0x24] sm:$0xf]
    %v101 = vld [vmem:[#allocation2 + $0x28] sm:$0xf]
    %v102 = vld [vmem:[#allocation2 + $0x2c] sm:$0xf]
    %v103 = vld [vmem:[#allocation2 + $0x30] sm:$0xf]
    %v104 = vld [vmem:[#allocation2 + $0x34] sm:$0xf]
    %v105 = vld [vmem:[#allocation2 + $0x38] sm:$0xf]
    %v106 = vld [vmem:[#allocation2 + $0x3c] sm:$0xf]
    %v107 = vunpack.c.l.bf16 %v91
    %v108 = vunpack.c.l.bf16 %v92
    %v109 = vunpack.c.l.bf16 %v93
    %v110 = vunpack.c.l.bf16 %v94
    %v111 = vunpack.c.l.bf16 %v95
    %v112 = vunpack.c.l.bf16 %v96
    %v113 = vunpack.c.l.bf16 %v97
    %v114 = vunpack.c.l.bf16 %v98
    %v115 = vunpack.c.l.bf16 %v99
    %v116 = vunpack.c.l.bf16 %v100
    %v117 = vunpack.c.l.bf16 %v101
    %v118 = vunpack.c.l.bf16 %v102
    %v119 = vunpack.c.l.bf16 %v103
    %v120 = vunpack.c.l.bf16 %v104
    %v121 = vunpack.c.l.bf16 %v105
    %v122 = vunpack.c.l.bf16 %v106
    %s123 = scalar_lea.vmem [#allocation5], %s74
    %v124 = vld [vmem:[%s123] sm:$0xff]
    %v125 = vld [vmem:[%s123 + $0x8] sm:$0xff]
    %v126 = vld [vmem:[%s123 + $0x10] sm:$0xff]
    %v127 = vld [vmem:[%s123 + $0x18] sm:$0xff]
    %v128 = vld [vmem:[%s123 + $0x20] sm:$0xff]
    %v129 = vld [vmem:[%s123 + $0x28] sm:$0xff]
    %v130 = vld [vmem:[%s123 + $0x30] sm:$0xff]
    %v131 = vld [vmem:[%s123 + $0x38] sm:$0xff]
    %v132 = vld [vmem:[%s123 + $0x40] sm:$0xff]
    %v133 = vld [vmem:[%s123 + $0x48] sm:$0xff]
    %v134 = vld [vmem:[%s123 + $0x50] sm:$0xff]
    %v135 = vld [vmem:[%s123 + $0x58] sm:$0xff]
    %v136 = vld [vmem:[%s123 + $0x60] sm:$0xff]
    %v137 = vld [vmem:[%s123 + $0x68] sm:$0xff]
    %v138 = vld [vmem:[%s123 + $0x70] sm:$0xff]
    %v139 = vld [vmem:[%s123 + $0x78] sm:$0xff]
    %140 = vmatprep.subr.mxu0 0.0
    %141 = vmatpush1.msra.mxu0 %v124
    %142 = vmatprep.subr.mxu0 0.0
    %143 = vmatpush1.msra.mxu0 %v125
    %144 = vmatprep.subr.mxu0 0.0
    %145 = vmatpush1.msra.mxu0 %v126
    %146 = vmatprep.subr.mxu0 0.0
    %147 = vmatpush1.msra.mxu0 %v127
    %148 = vmatprep.subr.mxu0 0.0
    %149 = vmatpush1.msra.mxu0 %v128
    %150 = vmatprep.subr.mxu0 0.0
    %151 = vmatpush1.msra.mxu0 %v129
    %152 = vmatprep.subr.mxu0 0.0
    %153 = vmatpush1.msra.mxu0 %v130
    %154 = vmatprep.subr.mxu0 0.0
    %155 = vmatpush1.msra.mxu0 %v131
    %156 = vmatprep.subr.mxu0 0.0
    %157 = vmatpush1.msra.mxu0 %v132
    %158 = vmatprep.subr.mxu0 0.0
    %159 = vmatpush1.msra.mxu0 %v133
    %160 = vmatprep.subr.mxu0 0.0
    %161 = vmatpush1.msra.mxu0 %v134
    %162 = vmatprep.subr.mxu0 0.0
    %163 = vmatpush1.msra.mxu0 %v135
    %164 = vmatprep.subr.mxu0 0.0
    %165 = vmatpush1.msra.mxu0 %v136
    %166 = vmatprep.subr.mxu0 0.0
    %167 = vmatpush1.msra.mxu0 %v137
    %168 = vmatprep.subr.mxu0 0.0
    %169 = vmatpush1.msra.mxu0 %v138
    %170 = vmatprep.subr.mxu0 0.0
    %171 = vmatpush1.msra.mxu0 %v139
    %172 = vmatprep.subr.mxu0 0.0
    %173 = vmatpush1.msra.mxu0 0.0
    %174 = vmatprep.subr.mxu0 0.0
    %175 = vmatpush1.msra.mxu0 0.0
    %176 = vmatprep.subr.mxu0 0.0
    %177 = vmatpush1.msra.mxu0 0.0
    %178 = vmatprep.subr.mxu0 0.0
    %179 = vmatpush1.msra.mxu0 0.0
    %180 = vmatprep.subr.mxu0 0.0
    %181 = vmatpush1.msra.mxu0 0.0
    %182 = vmatprep.subr.mxu0 0.0
    %183 = vmatpush1.msra.mxu0 0.0
    %184 = vmatprep.subr.mxu0 0.0
    %185 = vmatpush1.msra.mxu0 0.0
    %186 = vmatprep.subr.mxu0 0.0
    %187 = vmatpush1.msra.mxu0 0.0
    %188 = vmatprep.subr.mxu0 0.0
    %189 = vmatpush1.msra.mxu0 0.0
    %190 = vmatprep.subr.mxu0 0.0
    %191 = vmatpush1.msra.mxu0 0.0
    %192 = vmatprep.subr.mxu0 0.0
    %193 = vmatpush1.msra.mxu0 0.0
    %194 = vmatprep.subr.mxu0 0.0
    %195 = vmatpush1.msra.mxu0 0.0
    %196 = vmatprep.subr.mxu0 0.0
    %197 = vmatpush1.msra.mxu0 0.0
    %198 = vmatprep.subr.mxu0 0.0
    %199 = vmatpush1.msra.mxu0 0.0
    %200 = vmatprep.subr.mxu0 0.0
    %201 = vmatpush1.msra.mxu0 0.0
    %202 = vmatprep.subr.mxu0 0.0
    %203 = vmatpush1.msra.mxu0 0.0
    %204 = vmatprep.mubr.f32.mxu0 0.0
    %205 = vmatmul.mubr.f32.gmra.mrb[0].mxu0 %v107
    %v206 = vpop.f32.mrb[0].mxu0
    %v207 = vadd.f32 0.0, %v206
    %v208 = vpop.f32.mrb[0].mxu0
    %209 = vmatprep.mubr.f32.mxu0 0.0
    %210 = vmatmul.mubr.f32.gmra.mrb[0].mxu0 %v108
    %v211 = vpop.f32.mrb[0].mxu0
    %v212 = vadd.f32 0.0, %v211
    %v213 = vpop.f32.mrb[0].mxu0
    %214 = vmatprep.mubr.f32.mxu0 0.0
    %215 = vmatmul.mubr.f32.gmra.mrb[0].mxu0 %v109
    %v216 = vpop.f32.mrb[0].mxu0
    %v217 = vadd.f32 0.0, %v216
    %v218 = vpop.f32.mrb[0].mxu0
    %219 = vmatprep.mubr.f32.mxu0 0.0
    %220 = vmatmul.mubr.f32.gmra.mrb[0].mxu0 %v110
    %v221 = vpop.f32.mrb[0].mxu0
    %v222 = vadd.f32 0.0, %v221
    %v223 = vpop.f32.mrb[0].mxu0
    %224 = vmatprep.mubr.f32.mxu0 0.0
    %225 = vmatmul.mubr.f32.gmra.mrb[0].mxu0 %v111
    %v226 = vpop.f32.mrb[0].mxu0
    %v227 = vadd.f32 0.0, %v226
    %v228 = vpop.f32.mrb[0].mxu0
    %229 = vmatprep.mubr.f32.mxu0 0.0
    %230 = vmatmul.mubr.f32.gmra.mrb[0].mxu0 %v112
    %v231 = vpop.f32.mrb[0].mxu0
    %v232 = vadd.f32 0.0, %v231
    %v233 = vpop.f32.mrb[0].mxu0
    %234 = vmatprep.mubr.f32.mxu0 0.0
    %235 = vmatmul.mubr.f32.gmra.mrb[0].mxu0 %v113
    %v236 = vpop.f32.mrb[0].mxu0
    %v237 = vadd.f32 0.0, %v236
    %v238 = vpop.f32.mrb[0].mxu0
    %239 = vmatprep.mubr.f32.mxu0 0.0
    %240 = vmatmul.mubr.f32.gmra.mrb[0].mxu0 %v114
    %v241 = vpop.f32.mrb[0].mxu0
    %v242 = vadd.f32 0.0, %v241
    %v243 = vpop.f32.mrb[0].mxu0
    %244 = vmatprep.mubr.f32.mxu0 0.0
    %245 = vmatmul.mubr.f32.gmra.mrb[0].mxu0 %v115
    %v246 = vpop.f32.mrb[0].mxu0
    %v247 = vadd.f32 0.0, %v246
    %v248 = vpop.f32.mrb[0].mxu0
    %249 = vmatprep.mubr.f32.mxu0 0.0
    %250 = vmatmul.mubr.f32.gmra.mrb[0].mxu0 %v116
    %v251 = vpop.f32.mrb[0].mxu0
    %v252 = vadd.f32 0.0, %v251
    %v253 = vpop.f32.mrb[0].mxu0
    %254 = vmatprep.mubr.f32.mxu0 0.0
    %255 = vmatmul.mubr.f32.gmra.mrb[0].mxu0 %v117
    %v256 = vpop.f32.mrb[0].mxu0
    %v257 = vadd.f32 0.0, %v256
    %v258 = vpop.f32.mrb[0].mxu0
    %259 = vmatprep.mubr.f32.mxu0 0.0
    %260 = vmatmul.mubr.f32.gmra.mrb[0].mxu0 %v118
    %v261 = vpop.f32.mrb[0].mxu0
    %v262 = vadd.f32 0.0, %v261
    %v263 = vpop.f32.mrb[0].mxu0
    %264 = vmatprep.mubr.f32.mxu0 0.0
    %265 = vmatmul.mubr.f32.gmra.mrb[0].mxu0 %v119
    %v266 = vpop.f32.mrb[0].mxu0
    %v267 = vadd.f32 0.0, %v266
    %v268 = vpop.f32.mrb[0].mxu0
    %269 = vmatprep.mubr.f32.mxu0 0.0
    %270 = vmatmul.mubr.f32.gmra.mrb[0].mxu0 %v120
    %v271 = vpop.f32.mrb[0].mxu0
    %v272 = vadd.f32 0.0, %v271
    %v273 = vpop.f32.mrb[0].mxu0
    %274 = vmatprep.mubr.f32.mxu0 0.0
    %275 = vmatmul.mubr.f32.gmra.mrb[0].mxu0 %v121
    %v276 = vpop.f32.mrb[0].mxu0
    %v277 = vadd.f32 0.0, %v276
    %v278 = vpop.f32.mrb[0].mxu0
    %279 = vmatprep.mubr.f32.mxu0 0.0
    %280 = vmatmul.mubr.f32.gmra.mrb[0].mxu0 %v122
    %v281 = vpop.f32.mrb[0].mxu0
    %v282 = vadd.f32 0.0, %v281
    %v283 = vpop.f32.mrb[0].mxu0
    %284 = vdwg.mxu0
    %v285 = vadd.f32 %v75, %v207
    %v286 = vadd.f32 %v76, %v212
    %v287 = vadd.f32 %v77, %v217
    %v288 = vadd.f32 %v78, %v222
    %v289 = vadd.f32 %v79, %v227
    %v290 = vadd.f32 %v80, %v232
    %v291 = vadd.f32 %v81, %v237
    %v292 = vadd.f32 %v82, %v242
    %v293 = vadd.f32 %v83, %v247
    %v294 = vadd.f32 %v84, %v252
    %v295 = vadd.f32 %v85, %v257
    %v296 = vadd.f32 %v86, %v262
    %v297 = vadd.f32 %v87, %v267
    %v298 = vadd.f32 %v88, %v272
    %v299 = vadd.f32 %v89, %v277
    %v300 = vadd.f32 %v90, %v282
    %301 = vst [vmem:[#allocation8] sm:$0xff] %v285
    %302 = vst [vmem:[#allocation8 + $0x8] sm:$0xff] %v286
    %303 = vst [vmem:[#allocation8 + $0x10] sm:$0xff] %v287
    %304 = vst [vmem:[#allocation8 + $0x18] sm:$0xff] %v288
    %305 = vst [vmem:[#allocation8 + $0x20] sm:$0xff] %v289
    %306 = vst [vmem:[#allocation8 + $0x28] sm:$0xff] %v290
    %307 = vst [vmem:[#allocation8 + $0x30] sm:$0xff] %v291
    %308 = vst [vmem:[#allocation8 + $0x38] sm:$0xff] %v292
    %309 = vst [vmem:[#allocation8 + $0x40] sm:$0xff] %v293
    %310 = vst [vmem:[#allocation8 + $0x48] sm:$0xff] %v294
    %311 = vst [vmem:[#allocation8 + $0x50] sm:$0xff] %v295
    %312 = vst [vmem:[#allocation8 + $0x58] sm:$0xff] %v296
    %313 = vst [vmem:[#allocation8 + $0x60] sm:$0xff] %v297
    %314 = vst [vmem:[#allocation8 + $0x68] sm:$0xff] %v298
    %315 = vst [vmem:[#allocation8 + $0x70] sm:$0xff] %v299
    %316 = vst [vmem:[#allocation8 + $0x78] sm:$0xff] %v300
    // Predicated region
    $region30: #{gin_net.3} parent=1 // pred_check
      %p317 = pneg %p54
    $region31: #{gin_net.3} parent=1 // pred_check_branch
      %319 = sbr.rel (%p317) target = $region33
    $region32: #{gin_net.3} parent=1 // pred_region
      %v320 = vld [vmem:[#allocation8] sm:$0xff]
      %v321 = vld [vmem:[#allocation8 + $0x8] sm:$0xff]
      %v322 = vld [vmem:[#allocation8 + $0x10] sm:$0xff]
      %v323 = vld [vmem:[#allocation8 + $0x18] sm:$0xff]
      %v324 = vld [vmem:[#allocation8 + $0x20] sm:$0xff]
      %v325 = vld [vmem:[#allocation8 + $0x28] sm:$0xff]
      %v326 = vld [vmem:[#allocation8 + $0x30] sm:$0xff]
      %v327 = vld [vmem:[#allocation8 + $0x38] sm:$0xff]
      %v328 = vld [vmem:[#allocation8 + $0x40] sm:$0xff]
      %v329 = vld [vmem:[#allocation8 + $0x48] sm:$0xff]
      %v330 = vld [vmem:[#allocation8 + $0x50] sm:$0xff]
      %v331 = vld [vmem:[#allocation8 + $0x58] sm:$0xff]
      %v332 = vld [vmem:[#allocation8 + $0x60] sm:$0xff]
      %v333 = vld [vmem:[#allocation8 + $0x68] sm:$0xff]
      %v334 = vld [vmem:[#allocation8 + $0x70] sm:$0xff]
      %v335 = vld [vmem:[#allocation8 + $0x78] sm:$0xff]
      %v336 = vld [vmem:[#allocation7] sm:$0x1]
      %v338 = vlaneseq
      %v339 = vshrl.u32 %v338, 7
      %v340 = vsub.s32 0, %v339
      %v341 = vrot.slane %v336, %v340
      %v343 = vadd.f32 %v320, %v341
      %v344 = vadd.f32 %v321, %v341
      %v345 = vadd.f32 %v322, %v341
      %v346 = vadd.f32 %v323, %v341
      %v347 = vadd.f32 %v324, %v341
      %v348 = vadd.f32 %v325, %v341
      %v349 = vadd.f32 %v326, %v341
      %v350 = vadd.f32 %v327, %v341
      %v351 = vadd.f32 %v328, %v341
      %v352 = vadd.f32 %v329, %v341
      %v353 = vadd.f32 %v330, %v341
      %v354 = vadd.f32 %v331, %v341
      %v355 = vadd.f32 %v332, %v341
      %v356 = vadd.f32 %v333, %v341
      %v357 = vadd.f32 %v334, %v341
      %v358 = vadd.f32 %v335, %v341
      %v359 = vlaneseq
      %v360 = vand.u32 %v359, 127
      %vm361 = vcmp.lt.s32.totalorder %v360, 8
      %v362 = vsel %vm361, %v343, -inf
      %v363 = vsel %vm361, %v344, -inf
      %v364 = vsel %vm361, %v345, -inf
      %v365 = vsel %vm361, %v346, -inf
      %v366 = vsel %vm361, %v347, -inf
      %v367 = vsel %vm361, %v348, -inf
      %v368 = vsel %vm361, %v349, -inf
      %v369 = vsel %vm361, %v350, -inf
      %v370 = vsel %vm361, %v351, -inf
      %v371 = vsel %vm361, %v352, -inf
      %v372 = vsel %vm361, %v353, -inf
      %v373 = vsel %vm361, %v354, -inf
      %v374 = vsel %vm361, %v355, -inf
      %v375 = vsel %vm361, %v356, -inf
      %v376 = vsel %vm361, %v357, -inf
      %v377 = vsel %vm361, %v358, -inf
      %378 = vmax.xlane.f32.xlu0 %v362
      %v379 = vpop.xlane.xlu0 %378
      %380 = vmax.xlane.f32.xlu0 %v363
      %v381 = vpop.xlane.xlu0 %380
      %382 = vmax.xlane.f32.xlu0 %v364
      %v383 = vpop.xlane.xlu0 %382
      %384 = vmax.xlane.f32.xlu0 %v365
      %v385 = vpop.xlane.xlu0 %384
      %386 = vmax.xlane.f32.xlu0 %v366
      %v387 = vpop.xlane.xlu0 %386
      %388 = vmax.xlane.f32.xlu0 %v367
      %v389 = vpop.xlane.xlu0 %388
      %390 = vmax.xlane.f32.xlu0 %v368
      %v391 = vpop.xlane.xlu0 %390
      %392 = vmax.xlane.f32.xlu0 %v369
      %v393 = vpop.xlane.xlu0 %392
      %394 = vmax.xlane.f32.xlu0 %v370
      %v395 = vpop.xlane.xlu0 %394
      %396 = vmax.xlane.f32.xlu0 %v371
      %v397 = vpop.xlane.xlu0 %396
      %398 = vmax.xlane.f32.xlu0 %v372
      %v399 = vpop.xlane.xlu0 %398
      %400 = vmax.xlane.f32.xlu0 %v373
      %v401 = vpop.xlane.xlu0 %400
      %402 = vmax.xlane.f32.xlu0 %v374
      %v403 = vpop.xlane.xlu0 %402
      %404 = vmax.xlane.f32.xlu0 %v375
      %v405 = vpop.xlane.xlu0 %404
      %406 = vmax.xlane.f32.xlu0 %v376
      %v407 = vpop.xlane.xlu0 %406
      %408 = vmax.xlane.f32.xlu0 %v377
      %v409 = vpop.xlane.xlu0 %408
      %v410 = vsub.f32 %v343, %v379
      %v411 = vsub.f32 %v344, %v381
      %v412 = vsub.f32 %v345, %v383
      %v413 = vsub.f32 %v346, %v385
      %v414 = vsub.f32 %v347, %v387
      %v415 = vsub.f32 %v348, %v389
      %v416 = vsub.f32 %v349, %v391
      %v417 = vsub.f32 %v350, %v393
      %v418 = vsub.f32 %v351, %v395
      %v419 = vsub.f32 %v352, %v397
      %v420 = vsub.f32 %v353, %v399
      %v421 = vsub.f32 %v354, %v401
      %v422 = vsub.f32 %v355, %v403
      %v423 = vsub.f32 %v356, %v405
      %v424 = vsub.f32 %v357, %v407
      %v425 = vsub.f32 %v358, %v409
      %v426 = vsel %vm361, %v410, -inf
      %v427 = vsel %vm361, %v411, -inf
      %v428 = vsel %vm361, %v412, -inf
      %v429 = vsel %vm361, %v413, -inf
      %v430 = vsel %vm361, %v414, -inf
      %v431 = vsel %vm361, %v415, -inf
      %v432 = vsel %vm361, %v416, -inf
      %v433 = vsel %vm361, %v417, -inf
      %v434 = vsel %vm361, %v418, -inf
      %v435 = vsel %vm361, %v419, -inf
      %v436 = vsel %vm361, %v420, -inf
      %v437 = vsel %vm361, %v421, -inf
      %v438 = vsel %vm361, %v422, -inf
      %v439 = vsel %vm361, %v423, -inf
      %v440 = vsel %vm361, %v424, -inf
      %v441 = vsel %vm361, %v425, -inf
      %v442 = vmul.f32 %v426, 1.442695
      %v443 = vpow.pop %v442
      %v444 = vmul.f32 %v427, 1.442695
      %v445 = vpow.pop %v444
      %v446 = vmul.f32 %v428, 1.442695
      %v447 = vpow.pop %v446
      %v448 = vmul.f32 %v429, 1.442695
      %v449 = vpow.pop %v448
      %v450 = vmul.f32 %v430, 1.442695
      %v451 = vpow.pop %v450
      %v452 = vmul.f32 %v431, 1.442695
      %v453 = vpow.pop %v452
      %v454 = vmul.f32 %v432, 1.442695
      %v455 = vpow.pop %v454
      %v456 = vmul.f32 %v433, 1.442695
      %v457 = vpow.pop %v456
      %v458 = vmul.f32 %v434, 1.442695
      %v459 = vpow.pop %v458
      %v460 = vmul.f32 %v435, 1.442695
      %v461 = vpow.pop %v460
      %v462 = vmul.f32 %v436, 1.442695
      %v463 = vpow.pop %v462
      %v464 = vmul.f32 %v437, 1.442695
      %v465 = vpow.pop %v464
      %v466 = vmul.f32 %v438, 1.442695
      %v467 = vpow.pop %v466
      %v468 = vmul.f32 %v439, 1.442695
      %v469 = vpow.pop %v468
      %v470 = vmul.f32 %v440, 1.442695
      %v471 = vpow.pop %v470
      %v472 = vmul.f32 %v441, 1.442695
      %v473 = vpow.pop %v472
      %474 = vadd.xlane.f32.xlu0 %v443
      %v475 = vpop.xlane.xlu0 %474
      %476 = vadd.xlane.f32.xlu0 %v445
      %v477 = vpop.xlane.xlu0 %476
      %478 = vadd.xlane.f32.xlu0 %v447
      %v479 = vpop.xlane.xlu0 %478
      %480 = vadd.xlane.f32.xlu0 %v449
      %v481 = vpop.xlane.xlu0 %480
      %482 = vadd.xlane.f32.xlu0 %v451
      %v483 = vpop.xlane.xlu0 %482
      %484 = vadd.xlane.f32.xlu0 %v453
      %v485 = vpop.xlane.xlu0 %484
      %486 = vadd.xlane.f32.xlu0 %v455
      %v487 = vpop.xlane.xlu0 %486
      %488 = vadd.xlane.f32.xlu0 %v457
      %v489 = vpop.xlane.xlu0 %488
      %490 = vadd.xlane.f32.xlu0 %v459
      %v491 = vpop.xlane.xlu0 %490
      %492 = vadd.xlane.f32.xlu0 %v461
      %v493 = vpop.xlane.xlu0 %492
      %494 = vadd.xlane.f32.xlu0 %v463
      %v495 = vpop.xlane.xlu0 %494
      %496 = vadd.xlane.f32.xlu0 %v465
      %v497 = vpop.xlane.xlu0 %496
      %498 = vadd.xlane.f32.xlu0 %v467
      %v499 = vpop.xlane.xlu0 %498
      %500 = vadd.xlane.f32.xlu0 %v469
      %v501 = vpop.xlane.xlu0 %500
      %502 = vadd.xlane.f32.xlu0 %v471
      %v503 = vpop.xlane.xlu0 %502
      %504 = vadd.xlane.f32.xlu0 %v473
      %v505 = vpop.xlane.xlu0 %504
      %v506 = vlog2.pop %v475
      %v507 = vmul.f32 %v506, 0.6931472
      %v508 = vlog2.pop %v477
      %v509 = vmul.f32 %v508, 0.6931472
      %v510 = vlog2.pop %v479
      %v511 = vmul.f32 %v510, 0.6931472
      %v512 = vlog2.pop %v481
      %v513 = vmul.f32 %v512, 0.6931472
      %v514 = vlog2.pop %v483
      %v515 = vmul.f32 %v514, 0.6931472
      %v516 = vlog2.pop %v485
      %v517 = vmul.f32 %v516, 0.6931472
      %v518 = vlog2.pop %v487
      %v519 = vmul.f32 %v518, 0.6931472
      %v520 = vlog2.pop %v489
      %v521 = vmul.f32 %v520, 0.6931472
      %v522 = vlog2.pop %v491
      %v523 = vmul.f32 %v522, 0.6931472
      %v524 = vlog2.pop %v493
      %v525 = vmul.f32 %v524, 0.6931472
      %v526 = vlog2.pop %v495
      %v527 = vmul.f32 %v526, 0.6931472
      %v528 = vlog2.pop %v497
      %v529 = vmul.f32 %v528, 0.6931472
      %v530 = vlog2.pop %v499
      %v531 = vmul.f32 %v530, 0.6931472
      %v532 = vlog2.pop %v501
      %v533 = vmul.f32 %v532, 0.6931472
      %v534 = vlog2.pop %v503
      %v535 = vmul.f32 %v534, 0.6931472
      %v536 = vlog2.pop %v505
      %v537 = vmul.f32 %v536, 0.6931472
      %v538 = vsub.f32 %v410, %v507
      %v539 = vsub.f32 %v411, %v509
      %v540 = vsub.f32 %v412, %v511
      %v541 = vsub.f32 %v413, %v513
      %v542 = vsub.f32 %v414, %v515
      %v543 = vsub.f32 %v415, %v517
      %v544 = vsub.f32 %v416, %v519
      %v545 = vsub.f32 %v417, %v521
      %v546 = vsub.f32 %v418, %v523
      %v547 = vsub.f32 %v419, %v525
      %v548 = vsub.f32 %v420, %v527
      %v549 = vsub.f32 %v421, %v529
      %v550 = vsub.f32 %v422, %v531
      %v551 = vsub.f32 %v423, %v533
      %v552 = vsub.f32 %v424, %v535
      %v553 = vsub.f32 %v425, %v537
      %554 = vst [vmem:[#allocation8] sm:$0xff] %v538
      %555 = vst [vmem:[#allocation8 + $0x8] sm:$0xff] %v539
      %556 = vst [vmem:[#allocation8 + $0x10] sm:$0xff] %v540
      %557 = vst [vmem:[#allocation8 + $0x18] sm:$0xff] %v541
      %558 = vst [vmem:[#allocation8 + $0x20] sm:$0xff] %v542
      %559 = vst [vmem:[#allocation8 + $0x28] sm:$0xff] %v543
      %560 = vst [vmem:[#allocation8 + $0x30] sm:$0xff] %v544
      %561 = vst [vmem:[#allocation8 + $0x38] sm:$0xff] %v545
      %562 = vst [vmem:[#allocation8 + $0x40] sm:$0xff] %v546
      %563 = vst [vmem:[#allocation8 + $0x48] sm:$0xff] %v547
      %564 = vst [vmem:[#allocation8 + $0x50] sm:$0xff] %v548
      %565 = vst [vmem:[#allocation8 + $0x58] sm:$0xff] %v549
      %566 = vst [vmem:[#allocation8 + $0x60] sm:$0xff] %v550
      %567 = vst [vmem:[#allocation8 + $0x68] sm:$0xff] %v551
      %568 = vst [vmem:[#allocation8 + $0x70] sm:$0xff] %v552
      %569 = vst [vmem:[#allocation8 + $0x78] sm:$0xff] %v553
    $region33: #{gin_net.3} parent=1 // pred_fallthru
      _
    // Predicated region
    $region34: #{gin_net.3} parent=1 // pred_check
      _
    $region35: #{gin_net.3} parent=1 // pred_check_branch
      %571 = sbr.rel (0) target = $region37
    $region36: #{gin_net.3} parent=1 // pred_region
      %s573 = ssub.s32 2048, 2048
      %574 = vsyncadd [#allocation4], %s573
      %s575 = sshll.u32 [#allocation8], 4
      %s576 = int_to_ptr.vmem [resolvable:$true] %s575
      %581 = dma.vmem_to_hbm [thread:$0]  %s576, 2048, %s3, [#allocation4], 128, 128, 8
    $region37: #{gin_net.3} parent=1 // pred_fallthru
      _
    // Predicated region
    $region38: #{gin_net.3} parent=1 // pred_check
      _
    $region39: #{gin_net.3} parent=1 // pred_check_branch
      %583 = sbr.rel (0) target = $region41
    $region40: #{gin_net.3} parent=1 // pred_region
      %584 = dma.done [#allocation4], 2048
    $region41: #{gin_net.3} parent=1 // pred_fallthru
      _
    %585 = vsyncpa [#allocation3], 1
    %586 = vsyncpa [#allocation6], 1
    %587 = vsyncpa [#allocation4], 1

</llo_original>
